<compile_context>
chip_gen: v6e
topology: v6e:2x2x1
jax: 0.10.0
libtpu: 0.0.40
codegen_flags: <defaults>
</compile_context>

<pallas_src>
import functools

import jax
import jax.numpy as jnp
from jax import lax
from jax.experimental import pallas as pl
from jax.experimental.pallas import tpu as pltpu


def _round_up(x, m):
    return ((x + m - 1) // m) * m


# ----------------------------------------------------------------------------
# Fused kernel: Conv2d + GroupNorm + ELU + (Conv3d ∘ inverse-Haar) per image.
# ----------------------------------------------------------------------------
def _fused_kernel(xg_ref, w2s_ref, b2_ref, gamma_ref, beta_ref, mask_ref,
                  b3m_ref, bias3_ref, o_ref, xstack_ref, ylane_ref, ystack_ref,
                  *, ks, P2, Wp, M, Sa, Cin_p, C2, D, groups, gs, HW, eps):
    f32 = jnp.float32
    bf16 = jnp.bfloat16

    # ---------------- Conv2d ('same' zero pad): one MXU matmul ---------------
    # Stack the ks*ks lane-shifted windows of the padded input (bf16 copies),
    # then a single (C2, ks^2*Cin_p) x (ks^2*Cin_p, Sa) matmul with f32 acc.
    for t in range(ks * ks):
        ky, kx = t // ks, t % ks
        off = (ky - P2) * Wp + (kx - P2)
        xstack_ref[t * Cin_p:(t + 1) * Cin_p, :] = (
            xg_ref[:, M + off:M + off + Sa])
    acc2 = jnp.dot(w2s_ref[...], xstack_ref[...],
                   preferred_element_type=f32)                       # (C2, Sa)

    # ---------------- GroupNorm(groups) stats (bias folded, slab untouched) --
    m = mask_ref[...]                       # (1, Sa): 1.0 on the valid HxW
    inv_n = 1.0 / float(gs * HW)
    am = acc2 * m
    s1 = jnp.sum(am, axis=1, keepdims=True)           # (C2, 1)  sum x
    s2 = jnp.sum(am * acc2, axis=1, keepdims=True)    # (C2, 1)  sum x^2
    b2 = b2_ref[...]                                  # (C2, 1)  conv2d bias
    # statistics of (x + b2) derived from per-channel sums of x (vector math)
    s1b = s1 + float(HW) * b2
    s2b = s2 + 2.0 * b2 * s1 + float(HW) * (b2 * b2)
    if gs > 1:   # general group reduction (test path uses gs == 1)
        g1 = jnp.sum(s1b.reshape(groups, gs), axis=1, keepdims=True)
        g2 = jnp.sum(s2b.reshape(groups, gs), axis=1, keepdims=True)
        mean = jnp.broadcast_to(g1 * inv_n, (groups, gs)).reshape(C2, 1)
        ex2 = jnp.broadcast_to(g2 * inv_n, (groups, gs)).reshape(C2, 1)
    else:
        mean = s1b * inv_n
        ex2 = s2b * inv_n
    var = jnp.maximum(ex2 - mean * mean, 0.0)          # clamp: no negative var
    scale = gamma_ref[...] * lax.rsqrt(var + eps)      # (C2, 1)
    shift = beta_ref[...] + (b2 - mean) * scale        # (C2, 1)

    # ---------------- normalize + affine + ELU (2 slab passes) + mask --------
    y = acc2 * scale + shift
    y = jnp.where(y > 0.0, y, jnp.exp(jnp.minimum(y, 0.0)) - 1.0)   # ELU
    y = (y * m).astype(bf16)   # zero padding ring == conv3d's zero spatial pad

    # ------ Conv3d(1->Co, 3x3x3, pad 1) + inverse Haar, folded weights -------
    # y lives on the same flattened padded grid; zero lane margins make every
    # spatial tap a static lane-offset slice (pure bf16 VMEM copies).
    ylane_ref[:, 0:M] = jnp.zeros((D, M), bf16)
    ylane_ref[:, M + Sa:2 * M + Sa] = jnp.zeros((D, M), bf16)
    ylane_ref[:, M:M + Sa] = y
    for t in range(9):
        kh, kw = t // 3, t % 3
        off = (kh - 1) * Wp + (kw - 1)
        ystack_ref[t * D:(t + 1) * D, :] = ylane_ref[:, M + off:M + off + Sa]
    # Single banded MXU matmul: (4*Cl, 9*D) x (9*D, Sa) -> (4*Cl, Sa), f32 acc.
    res = jnp.dot(b3m_ref[...], ystack_ref[...], preferred_element_type=f32)
    o_ref[...] = res + bias3_ref[...]


# ----------------------------------------------------------------------------
# Wrapper: weight folding, padding/flattening, pallas_call, final pixel shuffle.
# ----------------------------------------------------------------------------
def wav_unpack_layer(x, params, *, groups=16, eps=1e-5):
    """Pallas forward matching WavUnpackLayer.forward (NCHW in, NCHW out)."""
    B, Cin, H, W = x.shape
    w2, b2 = params["w2"], params["b2"]
    w3, b3 = params["w3"], params["b3"]
    ks = w2.shape[0]
    C2 = w2.shape[-1]          # conv2d out channels == conv3d depth D
    Co = w3.shape[-1]          # conv3d out channels (== d)
    assert ks % 2 == 1, "odd kernel size expected for 'same' padding"
    assert C2 % groups == 0 and C2 % 16 == 0, "GroupNorm(16, C2) needs C2 % 16 == 0"
    assert Co % 4 == 0, "need conv3d out-channels divisible by 4 (wavelet bands)"
    D = C2
    csz = Co // 4
    Cl = csz * D               # final output channels
    gs = C2 // groups

    P2 = ks // 2               # conv2d 'same' pad
    P = max(P2, 1)             # shared padded grid also carries conv3d pad=1
    Hp, Wp = H + 2 * P, W + 2 * P
    S = Hp * Wp
    Sa = _round_up(S, 128)                                   # lane-dense width
    M = _round_up(max(P2 * (Wp + 1), Wp + 1), 128)           # lane margin
    Cin_p = _round_up(Cin, 16)

    # -- input: pad channels to Cin_p, spatial to (Hp,Wp), flatten, add margins,
    #    and ship to the kernel in bf16 (it is only ever consumed as bf16).
    xg = jnp.pad(x.astype(jnp.bfloat16),
                 ((0, 0), (0, Cin_p - Cin), (P, P), (P, P))).reshape(B, Cin_p, S)
    xg = jnp.pad(xg, ((0, 0), (0, 0), (M, M + Sa - S)))      # (B, Cin_p, 2M+Sa)

    # -- conv2d weights reshaped to match the stacked-tap layout: (C2, ks^2*Cin_p)
    w2p = jnp.pad(w2, ((0, 0), (0, 0), (0, Cin_p - Cin), (0, 0)))  # (ks,ks,Cin_p,C2)
    w2s = jnp.transpose(w2p, (3, 0, 1, 2)).reshape(C2, ks * ks * Cin_p)
    w2s = w2s.astype(jnp.bfloat16)
    b2c = b2.reshape(C2, 1).astype(jnp.float32)
    gamma = params["gamma"].reshape(C2, 1).astype(jnp.float32)
    beta = params["beta"].reshape(C2, 1).astype(jnp.float32)

    # -- interior (valid HxW) mask on the flattened padded grid
    hh = jnp.arange(Hp)
    ww = jnp.arange(Wp)
    m2 = ((hh[:, None] >= P) & (hh[:, None] < P + H) &
          (ww[None, :] >= P) & (ww[None, :] < P + W)).astype(jnp.float32)
    mask = jnp.pad(m2.reshape(1, S), ((0, 0), (0, Sa - S)))  # (1, Sa)

    # -- fold conv3d + inverse-Haar into one banded matrix (offline, tiny)
    # phases p: (dy,dx) = (0,0),(0,1),(1,0),(1,1); bands: [LL, LH, HL, HH]
    Hm = 0.5 * jnp.array([[1., 1., 1., 1.],
                          [1., 1., -1., -1.],
                          [1., -1., 1., -1.],
                          [1., -1., -1., 1.]], jnp.float32)
    w3r = w3.reshape(3, 3, 3, 4, csz)                 # [kd,kh,kw,band,cs]
    wf = jnp.einsum('pb,xyzbc->pcxyz', Hm, w3r)       # [p,cs,kd,kh,kw]
    dr = jnp.arange(D)
    rel = dr[None, :] - dr[:, None] + 1               # kd = j - d + 1
    valid = (rel >= 0) & (rel <= 2)
    relc = jnp.clip(rel, 0, 2)
    B6 = jnp.where(valid[None, None, :, :, None, None],
                   wf[:, :, relc, :, :], 0.0)         # [p,cs,d,j,kh,kw]
    b3m = jnp.transpose(B6, (0, 1, 2, 4, 5, 3)).reshape(4 * Cl, 9 * D)
    b3m = b3m.astype(jnp.bfloat16)
    bfold = jnp.einsum('pb,bc->pc', Hm, b3.reshape(4, csz))        # (4, csz)
    bias3 = jnp.broadcast_to(bfold[:, :, None], (4, csz, D)).reshape(4 * Cl, 1)
    bias3 = bias3.astype(jnp.float32)

    kern = functools.partial(
        _fused_kernel, ks=ks, P2=P2, Wp=Wp, M=M, Sa=Sa, Cin_p=Cin_p, C2=C2,
        D=D, groups=groups, gs=gs, HW=H * W, eps=eps)

    flops = 2 * B * Sa * (ks * ks * Cin_p * C2 + 9 * D * 4 * Cl)
    bytes_accessed = (2 * xg.size + 2 * w2s.size + 2 * b3m.size +
                      4 * (b2c.size + gamma.size + beta.size + mask.size +
                           bias3.size) + 4 * B * 4 * Cl * Sa)

    raw = pl.pallas_call(
        kern,
        out_shape=jax.ShapeDtypeStruct((B, 4 * Cl, Sa), jnp.float32),
        grid=(B,),
        in_specs=[
            pl.BlockSpec((None, Cin_p, 2 * M + Sa), lambda b: (b, 0, 0)),  # xg
            pl.BlockSpec((C2, ks * ks * Cin_p), lambda b: (0, 0)),         # w2s
            pl.BlockSpec((C2, 1), lambda b: (0, 0)),                       # b2
            pl.BlockSpec((C2, 1), lambda b: (0, 0)),                       # gamma
            pl.BlockSpec((C2, 1), lambda b: (0, 0)),                       # beta
            pl.BlockSpec((1, Sa), lambda b: (0, 0)),                       # mask
            pl.BlockSpec((4 * Cl, 9 * D), lambda b: (0, 0)),               # b3m
            pl.BlockSpec((4 * Cl, 1), lambda b: (0, 0)),                   # bias3
        ],
        out_specs=pl.BlockSpec((None, 4 * Cl, Sa), lambda b: (b, 0, 0)),
        scratch_shapes=[
            pltpu.VMEM((ks * ks * Cin_p, Sa), jnp.bfloat16),  # stacked conv2d taps
            pltpu.VMEM((D, 2 * M + Sa), jnp.bfloat16),        # margin buffer for y
            pltpu.VMEM((9 * D, Sa), jnp.bfloat16),            # stacked conv3d taps
        ],
        compiler_params=pltpu.CompilerParams(
            dimension_semantics=("parallel",),
            vmem_limit_bytes=32 * 1024 * 1024),
        cost_estimate=pl.CostEstimate(
            flops=int(flops),
            transcendentals=int(B * C2 * Sa),
            bytes_accessed=int(bytes_accessed)),
    )(xg, w2s, b2c, gamma, beta, mask, b3m, bias3)

    # -- 2x2 pixel shuffle of the 4 phases (single small XLA pass, NCHW out)
    r = raw[:, :, :S].reshape(B, 2, 2, Cl, Hp, Wp)[:, :, :, :, P:P + H, P:P + W]
    out = jnp.transpose(r, (0, 3, 4, 1, 5, 2)).reshape(B, Cl, 2 * H, 2 * W)
    return out


# ----------------------------------------------------------------------------
# Pure-JAX f32 reference (same math via lax.conv) for the correctness check.
# ----------------------------------------------------------------------------
def reference_forward(x_nchw, params, eps=1e-5, groups=16):
    hp = lax.Precision.HIGHEST
    w2, b2 = params["w2"], params["b2"]
    ks = w2.shape[0]
    pad = ks // 2
    y = lax.conv_general_dilated(
        x_nchw, jnp.transpose(w2, (3, 2, 0, 1)), (1, 1),
        [(pad, pad), (pad, pad)],
        dimension_numbers=("NCHW", "OIHW", "NCHW"), precision=hp)
    y = y + b2[None, :, None, None]
    B, C2, H, W = y.shape
    gs = C2 // groups
    yg = y.reshape(B, groups, gs, H, W)
    mean = yg.mean(axis=(2, 3, 4), keepdims=True)
    var = yg.var(axis=(2, 3, 4), keepdims=True)
    y = ((yg - mean) / jnp.sqrt(var + eps)).reshape(B, C2, H, W)
    y = y * params["gamma"][None, :, None, None] + params["beta"][None, :, None, None]
    y = jnp.where(y > 0.0, y, jnp.exp(jnp.minimum(y, 0.0)) - 1.0)
    w3, b3 = params["w3"], params["b3"]
    z = lax.conv_general_dilated(
        y[:, None], jnp.transpose(w3, (3, 0, 1, 2))[:, None], (1, 1, 1),
        [(1, 1), (1, 1), (1, 1)],
        dimension_numbers=("NCDHW", "OIDHW", "NCDHW"), precision=hp)
    z = z + b3[None, :, None, None, None]
    Bz, Co, D, Hh, Ww = z.shape
    z = z.reshape(Bz, Co * D, Hh, Ww)
    Cl = (Co * D) // 4
    ll, lh, hl, hh = (z[:, 0:Cl], z[:, Cl:2 * Cl],
                      z[:, 2 * Cl:3 * Cl], z[:, 3 * Cl:4 * Cl])
    out = jnp.zeros((Bz, Cl, 2 * Hh, 2 * Ww), jnp.float32)
    out = out.at[:, :, 0::2, 0::2].set(0.5 * (ll + lh + hl + hh))
    out = out.at[:, :, 0::2, 1::2].set(0.5 * (ll + lh - hl - hh))
    out = out.at[:, :, 1::2, 0::2].set(0.5 * (ll - lh + hl - hh))
    out = out.at[:, :, 1::2, 1::2].set(0.5 * (ll - lh - hl + hh))
    return out


if __name__ == "__main__":
    # Module hyper-params. GroupNorm(16, out_channels*4//d) requires that count
    # be a multiple of 16, so out_channels=32, d=8 -> 16 conv2d channels.
    in_channels, out_channels, kernel_size, r, d = 8, 32, 3, 2, 8
    C2 = out_channels * 4 // d      # 16: conv2d output channels (= 3D depth)
    Co = d                          # 8 : conv3d output channels
    B, H, W = 2, 16, 16

    key = jax.random.PRNGKey(0)
    kx, k1, k2, k3, k4 = jax.random.split(key, 5)
    x = jax.random.normal(kx, (B, in_channels, H, W), jnp.float32)
    params = dict(
        w2=jax.random.normal(k1, (kernel_size, kernel_size, in_channels, C2),
                             jnp.float32) * 0.1,
        b2=jax.random.normal(k2, (C2,), jnp.float32) * 0.1,
        gamma=jnp.ones((C2,), jnp.float32),   # GroupNorm default affine init
        beta=jnp.zeros((C2,), jnp.float32),
        w3=jax.random.normal(k3, (3, 3, 3, Co), jnp.float32) * 0.1,
        b3=jax.random.normal(k4, (Co,), jnp.float32) * 0.1,
    )

    fwd = jax.jit(wav_unpack_layer)
    out = jax.block_until_ready(fwd(x, params))
    ref = jax.block_until_ready(reference_forward(x, params))
    assert out.shape == (B, out_channels, 2 * H, 2 * W), out.shape
    max_err = float(jnp.max(jnp.abs(out - ref)))
    # bf16 MXU operands (f32 accumulation) through two conv stages + GroupNorm.
    assert bool(jnp.allclose(out, ref, atol=3e-2, rtol=3e-2)), max_err
    print("KERNEL_OK")
</pallas_src>

<mosaic_0001>
module attributes {stable_mosaic.version = 11 : i64} {
  func.func @_fused_kernel(%arg0: i32, %arg1: memref<1x16x640xbf16, #tpu.memory_space<vmem>>, %arg2: memref<16x144xbf16, #tpu.memory_space<vmem>>, %arg3: memref<16x1xf32, #tpu.memory_space<vmem>>, %arg4: memref<16x1xf32, #tpu.memory_space<vmem>>, %arg5: memref<16x1xf32, #tpu.memory_space<vmem>>, %arg6: memref<1x384xf32, #tpu.memory_space<vmem>>, %arg7: memref<128x144xbf16, #tpu.memory_space<vmem>>, %arg8: memref<128x1xf32, #tpu.memory_space<vmem>>, %arg9: memref<1x128x384xf32, #tpu.memory_space<vmem>>, %arg10: memref<144x384xbf16, #tpu.memory_space<vmem>>, %arg11: memref<16x640xbf16, #tpu.memory_space<vmem>>, %arg12: memref<144x384xbf16, #tpu.memory_space<vmem>>) attributes {dimension_semantics = [#tpu.dimension_semantics<parallel>], iteration_bounds = array<i64: 2>, scalar_prefetch = 0 : i64, scratch_operands = 3 : i64, tpu.core_type = #tpu.core_type<tc>, window_params = [{transform_indices = @transform_0, window_bounds = array<i64: 1, 16, 640>}, {pipeline_mode = #tpu.pipeline_mode<synchronous>, transform_indices = @transform_1, window_bounds = array<i64: 16, 144>}, {pipeline_mode = #tpu.pipeline_mode<synchronous>, transform_indices = @transform_2, window_bounds = array<i64: 16, 1>}, {pipeline_mode = #tpu.pipeline_mode<synchronous>, transform_indices = @transform_3, window_bounds = array<i64: 16, 1>}, {pipeline_mode = #tpu.pipeline_mode<synchronous>, transform_indices = @transform_4, window_bounds = array<i64: 16, 1>}, {pipeline_mode = #tpu.pipeline_mode<synchronous>, transform_indices = @transform_5, window_bounds = array<i64: 1, 384>}, {pipeline_mode = #tpu.pipeline_mode<synchronous>, transform_indices = @transform_6, window_bounds = array<i64: 128, 144>}, {pipeline_mode = #tpu.pipeline_mode<synchronous>, transform_indices = @transform_7, window_bounds = array<i64: 128, 1>}, {transform_indices = @transform_8, window_bounds = array<i64: 1, 128, 384>}]} {
    %c0 = arith.constant 0 : index
    %c0_0 = arith.constant 0 : index
    %c109 = arith.constant 109 : index
    %0 = vector.load %arg1[%c0, %c0_0, %c109] : memref<1x16x640xbf16, #tpu.memory_space<vmem>>, vector<1x16x384xbf16>
    %1 = vector.shape_cast %0 : vector<1x16x384xbf16> to vector<16x384xbf16>
    %c0_1 = arith.constant 0 : index
    %c0_2 = arith.constant 0 : index
    %2 = vector.load %arg10[%c0_1, %c0_2] : memref<144x384xbf16, #tpu.memory_space<vmem>>, vector<16x384xbf16>
    tpu.vector_store %arg10[%c0_1, %c0_2], %1 {strides = array<i32>} : memref<144x384xbf16, #tpu.memory_space<vmem>>, vector<16x384xbf16>,
    %c0_3 = arith.constant 0 : index
    %c0_4 = arith.constant 0 : index
    %c110 = arith.constant 110 : index
    %3 = vector.load %arg1[%c0_3, %c0_4, %c110] : memref<1x16x640xbf16, #tpu.memory_space<vmem>>, vector<1x16x384xbf16>
    %4 = vector.shape_cast %3 : vector<1x16x384xbf16> to vector<16x384xbf16>
    %c16 = arith.constant 16 : index
    %c0_5 = arith.constant 0 : index
    %5 = vector.load %arg10[%c16, %c0_5] : memref<144x384xbf16, #tpu.memory_space<vmem>>, vector<16x384xbf16>
    tpu.vector_store %arg10[%c16, %c0_5], %4 {strides = array<i32>} : memref<144x384xbf16, #tpu.memory_space<vmem>>, vector<16x384xbf16>,
    %c0_6 = arith.constant 0 : index
    %c0_7 = arith.constant 0 : index
    %c111 = arith.constant 111 : index
    %6 = vector.load %arg1[%c0_6, %c0_7, %c111] : memref<1x16x640xbf16, #tpu.memory_space<vmem>>, vector<1x16x384xbf16>
    %7 = vector.shape_cast %6 : vector<1x16x384xbf16> to vector<16x384xbf16>
    %c32 = arith.constant 32 : index
    %c0_8 = arith.constant 0 : index
    %8 = vector.load %arg10[%c32, %c0_8] : memref<144x384xbf16, #tpu.memory_space<vmem>>, vector<16x384xbf16>
    tpu.vector_store %arg10[%c32, %c0_8], %7 {strides = array<i32>} : memref<144x384xbf16, #tpu.memory_space<vmem>>, vector<16x384xbf16>,
    %c0_9 = arith.constant 0 : index
    %c0_10 = arith.constant 0 : index
    %c127 = arith.constant 127 : index
    %9 = vector.load %arg1[%c0_9, %c0_10, %c127] : memref<1x16x640xbf16, #tpu.memory_space<vmem>>, vector<1x16x384xbf16>
    %10 = vector.shape_cast %9 : vector<1x16x384xbf16> to vector<16x384xbf16>
    %c48 = arith.constant 48 : index
    %c0_11 = arith.constant 0 : index
    %11 = vector.load %arg10[%c48, %c0_11] : memref<144x384xbf16, #tpu.memory_space<vmem>>, vector<16x384xbf16>
    tpu.vector_store %arg10[%c48, %c0_11], %10 {strides = array<i32>} : memref<144x384xbf16, #tpu.memory_space<vmem>>, vector<16x384xbf16>,
    %c0_12 = arith.constant 0 : index
    %c0_13 = arith.constant 0 : index
    %c128 = arith.constant 128 : index
    %12 = vector.load %arg1[%c0_12, %c0_13, %c128] : memref<1x16x640xbf16, #tpu.memory_space<vmem>>, vector<1x16x384xbf16>
    %13 = vector.shape_cast %12 : vector<1x16x384xbf16> to vector<16x384xbf16>
    %c64 = arith.constant 64 : index
    %c0_14 = arith.constant 0 : index
    %14 = vector.load %arg10[%c64, %c0_14] : memref<144x384xbf16, #tpu.memory_space<vmem>>, vector<16x384xbf16>
    tpu.vector_store %arg10[%c64, %c0_14], %13 {strides = array<i32>} : memref<144x384xbf16, #tpu.memory_space<vmem>>, vector<16x384xbf16>,
    %c0_15 = arith.constant 0 : index
    %c0_16 = arith.constant 0 : index
    %c129 = arith.constant 129 : index
    %15 = vector.load %arg1[%c0_15, %c0_16, %c129] : memref<1x16x640xbf16, #tpu.memory_space<vmem>>, vector<1x16x384xbf16>
    %16 = vector.shape_cast %15 : vector<1x16x384xbf16> to vector<16x384xbf16>
    %c80 = arith.constant 80 : index
    %c0_17 = arith.constant 0 : index
    %17 = vector.load %arg10[%c80, %c0_17] : memref<144x384xbf16, #tpu.memory_space<vmem>>, vector<16x384xbf16>
    tpu.vector_store %arg10[%c80, %c0_17], %16 {strides = array<i32>} : memref<144x384xbf16, #tpu.memory_space<vmem>>, vector<16x384xbf16>,
    %c0_18 = arith.constant 0 : index
    %c0_19 = arith.constant 0 : index
    %c145 = arith.constant 145 : index
    %18 = vector.load %arg1[%c0_18, %c0_19, %c145] : memref<1x16x640xbf16, #tpu.memory_space<vmem>>, vector<1x16x384xbf16>
    %19 = vector.shape_cast %18 : vector<1x16x384xbf16> to vector<16x384xbf16>
    %c96 = arith.constant 96 : index
    %c0_20 = arith.constant 0 : index
    %20 = vector.load %arg10[%c96, %c0_20] : memref<144x384xbf16, #tpu.memory_space<vmem>>, vector<16x384xbf16>
    tpu.vector_store %arg10[%c96, %c0_20], %19 {strides = array<i32>} : memref<144x384xbf16, #tpu.memory_space<vmem>>, vector<16x384xbf16>,
    %c0_21 = arith.constant 0 : index
    %c0_22 = arith.constant 0 : index
    %c146 = arith.constant 146 : index
    %21 = vector.load %arg1[%c0_21, %c0_22, %c146] : memref<1x16x640xbf16, #tpu.memory_space<vmem>>, vector<1x16x384xbf16>
    %22 = vector.shape_cast %21 : vector<1x16x384xbf16> to vector<16x384xbf16>
    %c112 = arith.constant 112 : index
    %c0_23 = arith.constant 0 : index
    %23 = vector.load %arg10[%c112, %c0_23] : memref<144x384xbf16, #tpu.memory_space<vmem>>, vector<16x384xbf16>
    tpu.vector_store %arg10[%c112, %c0_23], %22 {strides = array<i32>} : memref<144x384xbf16, #tpu.memory_space<vmem>>, vector<16x384xbf16>,
    %c0_24 = arith.constant 0 : index
    %c0_25 = arith.constant 0 : index
    %c147 = arith.constant 147 : index
    %24 = vector.load %arg1[%c0_24, %c0_25, %c147] : memref<1x16x640xbf16, #tpu.memory_space<vmem>>, vector<1x16x384xbf16>
    %25 = vector.shape_cast %24 : vector<1x16x384xbf16> to vector<16x384xbf16>
    %c128_26 = arith.constant 128 : index
    %c0_27 = arith.constant 0 : index
    %26 = vector.load %arg10[%c128_26, %c0_27] : memref<144x384xbf16, #tpu.memory_space<vmem>>, vector<16x384xbf16>
    tpu.vector_store %arg10[%c128_26, %c0_27], %25 {strides = array<i32>} : memref<144x384xbf16, #tpu.memory_space<vmem>>, vector<16x384xbf16>,
    %c0_28 = arith.constant 0 : index
    %c0_29 = arith.constant 0 : index
    %27 = vector.load %arg2[%c0_28, %c0_29] : memref<16x144xbf16, #tpu.memory_space<vmem>>, vector<16x144xbf16>
    %c0_30 = arith.constant 0 : index
    %c0_31 = arith.constant 0 : index
    %28 = vector.load %arg10[%c0_30, %c0_31] : memref<144x384xbf16, #tpu.memory_space<vmem>>, vector<144x384xbf16>
    %cst = arith.constant dense<0.000000e+00> : vector<16x384xf32>
    %29 = tpu.matmul %27, %28, %cst {dimension_numbers = #tpu.dot_dimension_numbers<[1], [0], [0], [1], [0, 0, 1, 1], [], []>} : vector<16x144xbf16>, vector<144x384xbf16>, vector<16x384xf32> -> vector<16x384xf32>
    %c0_32 = arith.constant 0 : index
    %c0_33 = arith.constant 0 : index
    %30 = vector.load %arg6[%c0_32, %c0_33] : memref<1x384xf32, #tpu.memory_space<vmem>>, vector<1x384xf32>
    %31 = vector.broadcast %30 : vector<1x384xf32> to vector<16x384xf32>
    %32 = arith.mulf %29, %31 : vector<16x384xf32>
    %cst_34 = arith.constant dense<0.000000e+00> : vector<16xf32>
    %33 = vector.multi_reduction <add>, %32, %cst_34 [1] : vector<16x384xf32> to vector<16xf32>
    %34 = vector.shape_cast %33 : vector<16xf32> to vector<16x1xf32>
    %35 = arith.mulf %32, %29 : vector<16x384xf32>
    %cst_35 = arith.constant dense<0.000000e+00> : vector<16xf32>
    %36 = vector.multi_reduction <add>, %35, %cst_35 [1] : vector<16x384xf32> to vector<16xf32>
    %37 = vector.shape_cast %36 : vector<16xf32> to vector<16x1xf32>
    %c0_36 = arith.constant 0 : index
    %c0_37 = arith.constant 0 : index
    %38 = vector.load %arg3[%c0_36, %c0_37] : memref<16x1xf32, #tpu.memory_space<vmem>>, vector<16x1xf32>
    %cst_38 = arith.constant 2.560000e+02 : f32
    %39 = vector.broadcast %cst_38 : f32 to vector<16x1xf32>
    %40 = arith.mulf %39, %38 : vector<16x1xf32>
    %41 = arith.addf %34, %40 : vector<16x1xf32>
    %cst_39 = arith.constant 2.000000e+00 : f32
    %42 = vector.broadcast %cst_39 : f32 to vector<16x1xf32>
    %43 = arith.mulf %42, %38 : vector<16x1xf32>
    %44 = arith.mulf %43, %34 : vector<16x1xf32>
    %45 = arith.addf %37, %44 : vector<16x1xf32>
    %46 = arith.mulf %38, %38 : vector<16x1xf32>
    %cst_40 = arith.constant 2.560000e+02 : f32
    %47 = vector.broadcast %cst_40 : f32 to vector<16x1xf32>
    %48 = arith.mulf %47, %46 : vector<16x1xf32>
    %49 = arith.addf %45, %48 : vector<16x1xf32>
    %cst_41 = arith.constant 3.906250e-03 : f32
    %50 = vector.broadcast %cst_41 : f32 to vector<16x1xf32>
    %51 = arith.mulf %41, %50 : vector<16x1xf32>
    %cst_42 = arith.constant 3.906250e-03 : f32
    %52 = vector.broadcast %cst_42 : f32 to vector<16x1xf32>
    %53 = arith.mulf %49, %52 : vector<16x1xf32>
    %54 = arith.mulf %51, %51 : vector<16x1xf32>
    %55 = arith.subf %53, %54 : vector<16x1xf32>
    %cst_43 = arith.constant 0.000000e+00 : f32
    %56 = vector.broadcast %cst_43 : f32 to vector<16x1xf32>
    %57 = arith.maximumf %55, %56 : vector<16x1xf32>
    %c0_44 = arith.constant 0 : index
    %c0_45 = arith.constant 0 : index
    %58 = vector.load %arg4[%c0_44, %c0_45] : memref<16x1xf32, #tpu.memory_space<vmem>>, vector<16x1xf32>
    %cst_46 = arith.constant 9.99999974E-6 : f32
    %59 = vector.broadcast %cst_46 : f32 to vector<16x1xf32>
    %60 = arith.addf %57, %59 : vector<16x1xf32>
    %61 = math.rsqrt %60 : vector<16x1xf32>
    %62 = arith.mulf %58, %61 : vector<16x1xf32>
    %c0_47 = arith.constant 0 : index
    %c0_48 = arith.constant 0 : index
    %63 = vector.load %arg5[%c0_47, %c0_48] : memref<16x1xf32, #tpu.memory_space<vmem>>, vector<16x1xf32>
    %64 = arith.subf %38, %51 : vector<16x1xf32>
    %65 = arith.mulf %64, %62 : vector<16x1xf32>
    %66 = arith.addf %63, %65 : vector<16x1xf32>
    %67 = vector.broadcast %62 : vector<16x1xf32> to vector<16x384xf32>
    %68 = arith.mulf %29, %67 : vector<16x384xf32>
    %69 = vector.broadcast %66 : vector<16x1xf32> to vector<16x384xf32>
    %70 = arith.addf %68, %69 : vector<16x384xf32>
    %cst_49 = arith.constant 0.000000e+00 : f32
    %71 = vector.broadcast %cst_49 : f32 to vector<16x384xf32>
    %72 = arith.cmpf ogt, %70, %71 : vector<16x384xf32>
    %cst_50 = arith.constant 0.000000e+00 : f32
    %73 = vector.broadcast %cst_50 : f32 to vector<16x384xf32>
    %74 = arith.minimumf %70, %73 : vector<16x384xf32>
    %75 = math.exp %74 : vector<16x384xf32>
    %cst_51 = arith.constant 1.000000e+00 : f32
    %76 = vector.broadcast %cst_51 : f32 to vector<16x384xf32>
    %77 = arith.subf %75, %76 : vector<16x384xf32>
    %78 = arith.select %72, %70, %77 : vector<16x384xi1>, vector<16x384xf32>
    %79 = vector.broadcast %30 : vector<1x384xf32> to vector<16x384xf32>
    %80 = arith.mulf %78, %79 : vector<16x384xf32>
    %81 = arith.truncf %80 : vector<16x384xf32> to vector<16x384xbf16>
    %cst_52 = arith.constant 0.000000e+00 : bf16
    %82 = vector.broadcast %cst_52 : bf16 to vector<16x128xbf16>
    %c0_53 = arith.constant 0 : index
    %c0_54 = arith.constant 0 : index
    %83 = vector.load %arg11[%c0_53, %c0_54] : memref<16x640xbf16, #tpu.memory_space<vmem>>, vector<16x128xbf16>
    tpu.vector_store %arg11[%c0_53, %c0_54], %82 {strides = array<i32>} : memref<16x640xbf16, #tpu.memory_space<vmem>>, vector<16x128xbf16>,
    %cst_55 = arith.constant 0.000000e+00 : bf16
    %84 = vector.broadcast %cst_55 : bf16 to vector<16x128xbf16>
    %c0_56 = arith.constant 0 : index
    %c512 = arith.constant 512 : index
    %85 = vector.load %arg11[%c0_56, %c512] : memref<16x640xbf16, #tpu.memory_space<vmem>>, vector<16x128xbf16>
    tpu.vector_store %arg11[%c0_56, %c512], %84 {strides = array<i32>} : memref<16x640xbf16, #tpu.memory_space<vmem>>, vector<16x128xbf16>,
    %c0_57 = arith.constant 0 : index
    %c128_58 = arith.constant 128 : index
    %86 = vector.load %arg11[%c0_57, %c128_58] : memref<16x640xbf16, #tpu.memory_space<vmem>>, vector<16x384xbf16>
    tpu.vector_store %arg11[%c0_57, %c128_58], %81 {strides = array<i32>} : memref<16x640xbf16, #tpu.memory_space<vmem>>, vector<16x384xbf16>,
    %c0_59 = arith.constant 0 : index
    %c109_60 = arith.constant 109 : index
    %87 = vector.load %arg11[%c0_59, %c109_60] : memref<16x640xbf16, #tpu.memory_space<vmem>>, vector<16x384xbf16>
    %c0_61 = arith.constant 0 : index
    %c0_62 = arith.constant 0 : index
    %88 = vector.load %arg12[%c0_61, %c0_62] : memref<144x384xbf16, #tpu.memory_space<vmem>>, vector<16x384xbf16>
    tpu.vector_store %arg12[%c0_61, %c0_62], %87 {strides = array<i32>} : memref<144x384xbf16, #tpu.memory_space<vmem>>, vector<16x384xbf16>,
    %c0_63 = arith.constant 0 : index
    %c110_64 = arith.constant 110 : index
    %89 = vector.load %arg11[%c0_63, %c110_64] : memref<16x640xbf16, #tpu.memory_space<vmem>>, vector<16x384xbf16>
    %c16_65 = arith.constant 16 : index
    %c0_66 = arith.constant 0 : index
    %90 = vector.load %arg12[%c16_65, %c0_66] : memref<144x384xbf16, #tpu.memory_space<vmem>>, vector<16x384xbf16>
    tpu.vector_store %arg12[%c16_65, %c0_66], %89 {strides = array<i32>} : memref<144x384xbf16, #tpu.memory_space<vmem>>, vector<16x384xbf16>,
    %c0_67 = arith.constant 0 : index
    %c111_68 = arith.constant 111 : index
    %91 = vector.load %arg11[%c0_67, %c111_68] : memref<16x640xbf16, #tpu.memory_space<vmem>>, vector<16x384xbf16>
    %c32_69 = arith.constant 32 : index
    %c0_70 = arith.constant 0 : index
    %92 = vector.load %arg12[%c32_69, %c0_70] : memref<144x384xbf16, #tpu.memory_space<vmem>>, vector<16x384xbf16>
    tpu.vector_store %arg12[%c32_69, %c0_70], %91 {strides = array<i32>} : memref<144x384xbf16, #tpu.memory_space<vmem>>, vector<16x384xbf16>,
    %c0_71 = arith.constant 0 : index
    %c127_72 = arith.constant 127 : index
    %93 = vector.load %arg11[%c0_71, %c127_72] : memref<16x640xbf16, #tpu.memory_space<vmem>>, vector<16x384xbf16>
    %c48_73 = arith.constant 48 : index
    %c0_74 = arith.constant 0 : index
    %94 = vector.load %arg12[%c48_73, %c0_74] : memref<144x384xbf16, #tpu.memory_space<vmem>>, vector<16x384xbf16>
    tpu.vector_store %arg12[%c48_73, %c0_74], %93 {strides = array<i32>} : memref<144x384xbf16, #tpu.memory_space<vmem>>, vector<16x384xbf16>,
    %c0_75 = arith.constant 0 : index
    %c128_76 = arith.constant 128 : index
    %95 = vector.load %arg11[%c0_75, %c128_76] : memref<16x640xbf16, #tpu.memory_space<vmem>>, vector<16x384xbf16>
    %c64_77 = arith.constant 64 : index
    %c0_78 = arith.constant 0 : index
    %96 = vector.load %arg12[%c64_77, %c0_78] : memref<144x384xbf16, #tpu.memory_space<vmem>>, vector<16x384xbf16>
    tpu.vector_store %arg12[%c64_77, %c0_78], %95 {strides = array<i32>} : memref<144x384xbf16, #tpu.memory_space<vmem>>, vector<16x384xbf16>,
    %c0_79 = arith.constant 0 : index
    %c129_80 = arith.constant 129 : index
    %97 = vector.load %arg11[%c0_79, %c129_80] : memref<16x640xbf16, #tpu.memory_space<vmem>>, vector<16x384xbf16>
    %c80_81 = arith.constant 80 : index
    %c0_82 = arith.constant 0 : index
    %98 = vector.load %arg12[%c80_81, %c0_82] : memref<144x384xbf16, #tpu.memory_space<vmem>>, vector<16x384xbf16>
    tpu.vector_store %arg12[%c80_81, %c0_82], %97 {strides = array<i32>} : memref<144x384xbf16, #tpu.memory_space<vmem>>, vector<16x384xbf16>,
    %c0_83 = arith.constant 0 : index
    %c145_84 = arith.constant 145 : index
    %99 = vector.load %arg11[%c0_83, %c145_84] : memref<16x640xbf16, #tpu.memory_space<vmem>>, vector<16x384xbf16>
    %c96_85 = arith.constant 96 : index
    %c0_86 = arith.constant 0 : index
    %100 = vector.load %arg12[%c96_85, %c0_86] : memref<144x384xbf16, #tpu.memory_space<vmem>>, vector<16x384xbf16>
    tpu.vector_store %arg12[%c96_85, %c0_86], %99 {strides = array<i32>} : memref<144x384xbf16, #tpu.memory_space<vmem>>, vector<16x384xbf16>,
    %c0_87 = arith.constant 0 : index
    %c146_88 = arith.constant 146 : index
    %101 = vector.load %arg11[%c0_87, %c146_88] : memref<16x640xbf16, #tpu.memory_space<vmem>>, vector<16x384xbf16>
    %c112_89 = arith.constant 112 : index
    %c0_90 = arith.constant 0 : index
    %102 = vector.load %arg12[%c112_89, %c0_90] : memref<144x384xbf16, #tpu.memory_space<vmem>>, vector<16x384xbf16>
    tpu.vector_store %arg12[%c112_89, %c0_90], %101 {strides = array<i32>} : memref<144x384xbf16, #tpu.memory_space<vmem>>, vector<16x384xbf16>,
    %c0_91 = arith.constant 0 : index
    %c147_92 = arith.constant 147 : index
    %103 = vector.load %arg11[%c0_91, %c147_92] : memref<16x640xbf16, #tpu.memory_space<vmem>>, vector<16x384xbf16>
    %c128_93 = arith.constant 128 : index
    %c0_94 = arith.constant 0 : index
    %104 = vector.load %arg12[%c128_93, %c0_94] : memref<144x384xbf16, #tpu.memory_space<vmem>>, vector<16x384xbf16>
    tpu.vector_store %arg12[%c128_93, %c0_94], %103 {strides = array<i32>} : memref<144x384xbf16, #tpu.memory_space<vmem>>, vector<16x384xbf16>,
    %c0_95 = arith.constant 0 : index
    %c0_96 = arith.constant 0 : index
    %105 = vector.load %arg7[%c0_95, %c0_96] : memref<128x144xbf16, #tpu.memory_space<vmem>>, vector<128x144xbf16>
    %c0_97 = arith.constant 0 : index
    %c0_98 = arith.constant 0 : index
    %106 = vector.load %arg12[%c0_97, %c0_98] : memref<144x384xbf16, #tpu.memory_space<vmem>>, vector<144x384xbf16>
    %cst_99 = arith.constant dense<0.000000e+00> : vector<128x384xf32>
    %107 = tpu.matmul %105, %106, %cst_99 {dimension_numbers = #tpu.dot_dimension_numbers<[1], [0], [0], [1], [0, 0, 1, 1], [], []>} : vector<128x144xbf16>, vector<144x384xbf16>, vector<128x384xf32> -> vector<128x384xf32>
    %c0_100 = arith.constant 0 : index
    %c0_101 = arith.constant 0 : index
    %108 = vector.load %arg8[%c0_100, %c0_101] : memref<128x1xf32, #tpu.memory_space<vmem>>, vector<128x1xf32>
    %109 = vector.broadcast %108 : vector<128x1xf32> to vector<128x384xf32>
    %110 = arith.addf %107, %109 : vector<128x384xf32>
    %c0_102 = arith.constant 0 : index
    %c0_103 = arith.constant 0 : index
    %c0_104 = arith.constant 0 : index
    %111 = vector.load %arg9[%c0_102, %c0_103, %c0_104] : memref<1x128x384xf32, #tpu.memory_space<vmem>>, vector<1x128x384xf32>
    %112 = vector.shape_cast %111 : vector<1x128x384xf32> to vector<128x384xf32>
    %113 = vector.shape_cast %110 : vector<128x384xf32> to vector<1x128x384xf32>
    tpu.vector_store %arg9[%c0_102, %c0_103, %c0_104], %113 {strides = array<i32>} : memref<1x128x384xf32, #tpu.memory_space<vmem>>, vector<1x128x384xf32>,
    return
  }
  func.func @transform_0(%arg0: i32) -> (i32, i32, i32) {
    %c0_i32 = arith.constant 0 : i32
    %c0_i32_0 = arith.constant 0 : i32
    %c0_i32_1 = arith.constant 0 : i32
    return %arg0, %c0_i32, %c0_i32_0 : i32, i32, i32
  }
  func.func @transform_1(%arg0: i32) -> (i32, i32) {
    %c0_i32 = arith.constant 0 : i32
    %c0_i32_0 = arith.constant 0 : i32
    %c0_i32_1 = arith.constant 0 : i32
    return %c0_i32, %c0_i32_0 : i32, i32
  }
  func.func @transform_2(%arg0: i32) -> (i32, i32) {
    %c0_i32 = arith.constant 0 : i32
    %c0_i32_0 = arith.constant 0 : i32
    %c0_i32_1 = arith.constant 0 : i32
    return %c0_i32, %c0_i32_0 : i32, i32
  }
  func.func @transform_3(%arg0: i32) -> (i32, i32) {
    %c0_i32 = arith.constant 0 : i32
    %c0_i32_0 = arith.constant 0 : i32
    %c0_i32_1 = arith.constant 0 : i32
    return %c0_i32, %c0_i32_0 : i32, i32
  }
  func.func @transform_4(%arg0: i32) -> (i32, i32) {
    %c0_i32 = arith.constant 0 : i32
    %c0_i32_0 = arith.constant 0 : i32
    %c0_i32_1 = arith.constant 0 : i32
    return %c0_i32, %c0_i32_0 : i32, i32
  }
  func.func @transform_5(%arg0: i32) -> (i32, i32) {
    %c0_i32 = arith.constant 0 : i32
    %c0_i32_0 = arith.constant 0 : i32
    %c0_i32_1 = arith.constant 0 : i32
    return %c0_i32, %c0_i32_0 : i32, i32
  }
  func.func @transform_6(%arg0: i32) -> (i32, i32) {
    %c0_i32 = arith.constant 0 : i32
    %c0_i32_0 = arith.constant 0 : i32
    %c0_i32_1 = arith.constant 0 : i32
    return %c0_i32, %c0_i32_0 : i32, i32
  }
  func.func @transform_7(%arg0: i32) -> (i32, i32) {
    %c0_i32 = arith.constant 0 : i32
    %c0_i32_0 = arith.constant 0 : i32
    %c0_i32_1 = arith.constant 0 : i32
    return %c0_i32, %c0_i32_0 : i32, i32
  }
  func.func @transform_8(%arg0: i32) -> (i32, i32, i32) {
    %c0_i32 = arith.constant 0 : i32
    %c0_i32_0 = arith.constant 0 : i32
    %c0_i32_1 = arith.constant 0 : i32
    return %arg0, %c0_i32, %c0_i32_0 : i32, i32, i32
  }
}

</mosaic_0001>

<llo_original>
// kernel: wav_unpack_layer.1
$region0: #{wav_unpack_layer.1}
  #allocation0 [shape = 'u32[]', space=smem, size = 0x4, offset = 0x4, fixed_abs, tag = 'smem constant byte address 0x4 - core index']
  #allocation1 [shape = 'u32[144,128]{1,0:T(1,128)}', space=vmem, size = 0x12000, scoped, tag = 'internal scratch']
  #allocation2 [shape = 'bf16[144,384]{1,0:T(8,128)(2,1)}', space=vmem, size = 0x1b000, scoped, tag = 'scratch operand']
  #allocation3 [shape = 'bf16[16,640]{1,0:T(8,128)(2,1)}', space=vmem, size = 0x5000, scoped, tag = 'scratch operand']
  #allocation4 [shape = 'bf16[144,384]{1,0:T(8,128)(2,1)}', space=vmem, size = 0x1b000, scoped, tag = 'scratch operand']
  %s0 = inlined_call_operand.vmem [shape: bf16[2,16,640], index: 0, kind: input, shape index: {}]
  %s1 = inlined_call_operand.vmem [shape: bf16[16,144], index: 1, kind: input, shape index: {}]
  %s2 = inlined_call_operand.vmem [shape: f32[16,1], index: 2, kind: input, shape index: {}]
  %s3 = inlined_call_operand.vmem [shape: f32[16,1], index: 3, kind: input, shape index: {}]
  %s4 = inlined_call_operand.vmem [shape: f32[16,1], index: 4, kind: input, shape index: {}]
  %s5 = inlined_call_operand.vmem [shape: f32[1,384], index: 5, kind: input, shape index: {}]
  %s6 = inlined_call_operand.vmem [shape: bf16[128,144], index: 6, kind: input, shape index: {}]
  %s7 = inlined_call_operand.vmem [shape: f32[128,1], index: 7, kind: input, shape index: {}]
  %s8 = inlined_call_operand.vmem [shape: f32[2,128,384], index: 8, kind: output, shape index: {}]
  %s9 = sld [smem:[#allocation0]]
  $region65: #{wav_unpack_layer.1} parent=0
    _
  %s11 = ssub.s32 1, %s9
  %s12 = scalar_select 0, %s11, %s9
  loop: start=0, step=1, limit=4
  $region2: #{wav_unpack_layer.1} parent=0 // loop_pre_header
    _
  $region3: #{wav_unpack_layer.1} parent=0 // loop_header
    %s14 = sphi 0, %s18
    %p15 = scmp.ge.s32.totalorder %s14, 4
    %s24 = sphi 0, %s26
    %s27 = sphi 0, %s24
    %s28 = sphi 0, %s27
    %s44 = sphi 0, %s28
    %s48 = sphi 0, %s48
    %s50 = sphi 0, %s48
    %s51 = sphi 0, %s50
    %s65 = sphi 0, %s51
    %s69 = sphi 0, %s69
    %s71 = sphi 0, %s69
    %s72 = sphi 0, %s71
    %s86 = sphi 0, %s72
    %s90 = sphi 0, %s90
    %s92 = sphi 0, %s90
    %s93 = sphi 0, %s92
    %s107 = sphi 0, %s93
    %s111 = sphi 0, %s111
    %s113 = sphi 0, %s111
    %s114 = sphi 0, %s113
    %s128 = sphi 0, %s114
    %s132 = sphi 0, %s132
    %s134 = sphi 0, %s132
    %s135 = sphi 0, %s134
    %s149 = sphi 0, %s135
    %s153 = sphi 0, %s153
    %s155 = sphi 0, %s153
    %s156 = sphi 0, %s155
    %s170 = sphi 0, %s156
    %s174 = sphi 0, %s174
    %s176 = sphi 0, %s174
    %s177 = sphi 0, %s176
    %s191 = sphi 0, %s177
    %s197 = sphi 0, %s199
    %s200 = sphi 0, %s197
    %s201 = sphi 0, %s200
    %s217 = sphi 0, %s201
  $region4: #{wav_unpack_layer.1} parent=0 // loop_header_branch
    %17 = sbr.rel (%p15) target = $region8
  $region5: #{wav_unpack_layer.1} parent=0 // loop_body
    %s19 = ssub.s32 %s14, 1
    %s20 = ssub.s32 %s14, 2
    %s21 = sadd.s32 %s14, 1
    %s22 = ssub.s32 %s14, %s21
    %p23 = scmp.eq.s32.totalorder %s22, 0
    %s25 = sadd.s32 %s24, 1
    %s26 = scalar_select %p23, %s24, %s25
    %p29 = pneg %p23
    %p30 = scmp.eq.s32.totalorder %s14, 1
    %p31 = por %p29, %p30
    %p32 = scmp.ne.s32.totalorder %s24, %s27
    %p33 = scmp.eq.s32.totalorder %s14, 0
    %p34 = por %p32, %p33
    %p35 = scmp.ne.s32.totalorder %s24, %s27
    %p36 = scmp.eq.s32.totalorder %s19, 1
    %p37 = por %p35, %p36
    %p38 = scmp.ne.s32.totalorder %s27, %s28
    %p39 = scmp.eq.s32.totalorder %s19, 0
    %p40 = por %p38, %p39
    %p41 = scmp.ne.s32.totalorder %s27, %s28
    %p42 = scmp.eq.s32.totalorder %s20, 1
    %p43 = por %p41, %p42
    %p45 = scmp.ne.s32.totalorder %s28, %s44
    %p46 = scmp.eq.s32.totalorder %s20, 0
    %p47 = por %p45, %p46
    %s49 = sadd.s32 %s48, 1
    %p52 = scmp.eq.s32.totalorder %s14, 1
    %p53 = scmp.ne.s32.totalorder %s48, %s50
    %p54 = scmp.eq.s32.totalorder %s14, 0
    %p55 = por %p53, %p54
    %p56 = scmp.ne.s32.totalorder %s48, %s50
    %p57 = scmp.eq.s32.totalorder %s19, 1
    %p58 = por %p56, %p57
    %p59 = scmp.ne.s32.totalorder %s50, %s51
    %p60 = scmp.eq.s32.totalorder %s19, 0
    %p61 = por %p59, %p60
    %p62 = scmp.ne.s32.totalorder %s50, %s51
    %p63 = scmp.eq.s32.totalorder %s20, 1
    %p64 = por %p62, %p63
    %p66 = scmp.ne.s32.totalorder %s51, %s65
    %p67 = scmp.eq.s32.totalorder %s20, 0
    %p68 = por %p66, %p67
    %s70 = sadd.s32 %s69, 1
    %p73 = scmp.eq.s32.totalorder %s14, 1
    %p74 = scmp.ne.s32.totalorder %s69, %s71
    %p75 = scmp.eq.s32.totalorder %s14, 0
    %p76 = por %p74, %p75
    %p77 = scmp.ne.s32.totalorder %s69, %s71
    %p78 = scmp.eq.s32.totalorder %s19, 1
    %p79 = por %p77, %p78
    %p80 = scmp.ne.s32.totalorder %s71, %s72
    %p81 = scmp.eq.s32.totalorder %s19, 0
    %p82 = por %p80, %p81
    %p83 = scmp.ne.s32.totalorder %s71, %s72
    %p84 = scmp.eq.s32.totalorder %s20, 1
    %p85 = por %p83, %p84
    %p87 = scmp.ne.s32.totalorder %s72, %s86
    %p88 = scmp.eq.s32.totalorder %s20, 0
    %p89 = por %p87, %p88
    %s91 = sadd.s32 %s90, 1
    %p94 = scmp.eq.s32.totalorder %s14, 1
    %p95 = scmp.ne.s32.totalorder %s90, %s92
    %p96 = scmp.eq.s32.totalorder %s14, 0
    %p97 = por %p95, %p96
    %p98 = scmp.ne.s32.totalorder %s90, %s92
    %p99 = scmp.eq.s32.totalorder %s19, 1
    %p100 = por %p98, %p99
    %p101 = scmp.ne.s32.totalorder %s92, %s93
    %p102 = scmp.eq.s32.totalorder %s19, 0
    %p103 = por %p101, %p102
    %p104 = scmp.ne.s32.totalorder %s92, %s93
    %p105 = scmp.eq.s32.totalorder %s20, 1
    %p106 = por %p104, %p105
    %p108 = scmp.ne.s32.totalorder %s93, %s107
    %p109 = scmp.eq.s32.totalorder %s20, 0
    %p110 = por %p108, %p109
    %s112 = sadd.s32 %s111, 1
    %p115 = scmp.eq.s32.totalorder %s14, 1
    %p116 = scmp.ne.s32.totalorder %s111, %s113
    %p117 = scmp.eq.s32.totalorder %s14, 0
    %p118 = por %p116, %p117
    %p119 = scmp.ne.s32.totalorder %s111, %s113
    %p120 = scmp.eq.s32.totalorder %s19, 1
    %p121 = por %p119, %p120
    %p122 = scmp.ne.s32.totalorder %s113, %s114
    %p123 = scmp.eq.s32.totalorder %s19, 0
    %p124 = por %p122, %p123
    %p125 = scmp.ne.s32.totalorder %s113, %s114
    %p126 = scmp.eq.s32.totalorder %s20, 1
    %p127 = por %p125, %p126
    %p129 = scmp.ne.s32.totalorder %s114, %s128
    %p130 = scmp.eq.s32.totalorder %s20, 0
    %p131 = por %p129, %p130
    %s133 = sadd.s32 %s132, 1
    %p136 = scmp.eq.s32.totalorder %s14, 1
    %p137 = scmp.ne.s32.totalorder %s132, %s134
    %p138 = scmp.eq.s32.totalorder %s14, 0
    %p139 = por %p137, %p138
    %p140 = scmp.ne.s32.totalorder %s132, %s134
    %p141 = scmp.eq.s32.totalorder %s19, 1
    %p142 = por %p140, %p141
    %p143 = scmp.ne.s32.totalorder %s134, %s135
    %p144 = scmp.eq.s32.totalorder %s19, 0
    %p145 = por %p143, %p144
    %p146 = scmp.ne.s32.totalorder %s134, %s135
    %p147 = scmp.eq.s32.totalorder %s20, 1
    %p148 = por %p146, %p147
    %p150 = scmp.ne.s32.totalorder %s135, %s149
    %p151 = scmp.eq.s32.totalorder %s20, 0
    %p152 = por %p150, %p151
    %s154 = sadd.s32 %s153, 1
    %p157 = scmp.eq.s32.totalorder %s14, 1
    %p158 = scmp.ne.s32.totalorder %s153, %s155
    %p159 = scmp.eq.s32.totalorder %s14, 0
    %p160 = por %p158, %p159
    %p161 = scmp.ne.s32.totalorder %s153, %s155
    %p162 = scmp.eq.s32.totalorder %s19, 1
    %p163 = por %p161, %p162
    %p164 = scmp.ne.s32.totalorder %s155, %s156
    %p165 = scmp.eq.s32.totalorder %s19, 0
    %p166 = por %p164, %p165
    %p167 = scmp.ne.s32.totalorder %s155, %s156
    %p168 = scmp.eq.s32.totalorder %s20, 1
    %p169 = por %p167, %p168
    %p171 = scmp.ne.s32.totalorder %s156, %s170
    %p172 = scmp.eq.s32.totalorder %s20, 0
    %p173 = por %p171, %p172
    %s175 = sadd.s32 %s174, 1
    %p178 = scmp.eq.s32.totalorder %s14, 1
    %p179 = scmp.ne.s32.totalorder %s174, %s176
    %p180 = scmp.eq.s32.totalorder %s14, 0
    %p181 = por %p179, %p180
    %p182 = scmp.ne.s32.totalorder %s174, %s176
    %p183 = scmp.eq.s32.totalorder %s19, 1
    %p184 = por %p182, %p183
    %p185 = scmp.ne.s32.totalorder %s176, %s177
    %p186 = scmp.eq.s32.totalorder %s19, 0
    %p187 = por %p185, %p186
    %p188 = scmp.ne.s32.totalorder %s176, %s177
    %p189 = scmp.eq.s32.totalorder %s20, 1
    %p190 = por %p188, %p189
    %p192 = scmp.ne.s32.totalorder %s177, %s191
    %p193 = scmp.eq.s32.totalorder %s20, 0
    %p194 = por %p192, %p193
    %s195 = ssub.s32 %s14, %s21
    %p196 = scmp.eq.s32.totalorder %s195, 0
    %s198 = sadd.s32 %s197, 1
    %s199 = scalar_select %p196, %s197, %s198
    %p202 = pneg %p196
    %p203 = scmp.eq.s32.totalorder %s14, 1
    %p204 = por %p202, %p203
    %p205 = scmp.ne.s32.totalorder %s197, %s200
    %p206 = scmp.eq.s32.totalorder %s14, 0
    %p207 = por %p205, %p206
    %p208 = scmp.ne.s32.totalorder %s197, %s200
    %p209 = scmp.eq.s32.totalorder %s19, 1
    %p210 = por %p208, %p209
    %p211 = scmp.ne.s32.totalorder %s200, %s201
    %p212 = scmp.eq.s32.totalorder %s19, 0
    %p213 = por %p211, %p212
    %p214 = scmp.ne.s32.totalorder %s200, %s201
    %p215 = scmp.eq.s32.totalorder %s20, 1
    %p216 = por %p214, %p215
    %p218 = scmp.ne.s32.totalorder %s201, %s217
    %p219 = scmp.eq.s32.totalorder %s20, 0
    %p220 = por %p218, %p219
    %p221 = scmp.le.s32.totalorder 1, %s14
    %p222 = scmp.lt.s32.totalorder %s14, 3
    %p223 = pnand %p221, %p222
    %p224 = pneg %p223
    // Predicated region
    $region9: #{wav_unpack_layer.1} parent=5 // pred_check
      _
    $region10: #{wav_unpack_layer.1} parent=5 // pred_check_branch
      %226 = sbr.rel (%p223) target = $region12
    $region11: #{wav_unpack_layer.1} parent=5 // pred_region
      %s227 = ssub.s32 %s14, 1
      // Predicated region
      $region13: #{wav_unpack_layer.1} parent=11 // pred_check
        %p228 = pneg %p61
      $region14: #{wav_unpack_layer.1} parent=11 // pred_check_branch
        %230 = sbr.rel (%p228) target = $region16
      $region15: #{wav_unpack_layer.1} parent=11 // pred_region
        _
      $region16: #{wav_unpack_layer.1} parent=11 // pred_fallthru
        _
      // Predicated region
      $region17: #{wav_unpack_layer.1} parent=11 // pred_check
        %p231 = pneg %p82
      $region18: #{wav_unpack_layer.1} parent=11 // pred_check_branch
        %233 = sbr.rel (%p231) target = $region20
      $region19: #{wav_unpack_layer.1} parent=11 // pred_region
        _
      $region20: #{wav_unpack_layer.1} parent=11 // pred_fallthru
        _
      // Predicated region
      $region21: #{wav_unpack_layer.1} parent=11 // pred_check
        %p234 = pneg %p103
      $region22: #{wav_unpack_layer.1} parent=11 // pred_check_branch
        %236 = sbr.rel (%p234) target = $region24
      $region23: #{wav_unpack_layer.1} parent=11 // pred_region
        _
      $region24: #{wav_unpack_layer.1} parent=11 // pred_fallthru
        _
      // Predicated region
      $region25: #{wav_unpack_layer.1} parent=11 // pred_check
        %p237 = pneg %p124
      $region26: #{wav_unpack_layer.1} parent=11 // pred_check_branch
        %239 = sbr.rel (%p237) target = $region28
      $region27: #{wav_unpack_layer.1} parent=11 // pred_region
        _
      $region28: #{wav_unpack_layer.1} parent=11 // pred_fallthru
        _
      // Predicated region
      $region29: #{wav_unpack_layer.1} parent=11 // pred_check
        %p240 = pneg %p145
      $region30: #{wav_unpack_layer.1} parent=11 // pred_check_branch
        %242 = sbr.rel (%p240) target = $region32
      $region31: #{wav_unpack_layer.1} parent=11 // pred_region
        _
      $region32: #{wav_unpack_layer.1} parent=11 // pred_fallthru
        _
      // Predicated region
      $region33: #{wav_unpack_layer.1} parent=11 // pred_check
        %p243 = pneg %p166
      $region34: #{wav_unpack_layer.1} parent=11 // pred_check_branch
        %245 = sbr.rel (%p243) target = $region36
      $region35: #{wav_unpack_layer.1} parent=11 // pred_region
        _
      $region36: #{wav_unpack_layer.1} parent=11 // pred_fallthru
        _
      // Predicated region
      $region37: #{wav_unpack_layer.1} parent=11 // pred_check
        %p246 = pneg %p187
      $region38: #{wav_unpack_layer.1} parent=11 // pred_check_branch
        %248 = sbr.rel (%p246) target = $region40
      $region39: #{wav_unpack_layer.1} parent=11 // pred_region
        _
      $region40: #{wav_unpack_layer.1} parent=11 // pred_fallthru
        _
    $region12: #{wav_unpack_layer.1} parent=5 // pred_fallthru
      _
    %p249 = scmp.lt.s32.totalorder %s14, 2
    // Predicated region
    $region41: #{wav_unpack_layer.1} parent=5 // pred_check
      %p250 = pneg %p249
    $region42: #{wav_unpack_layer.1} parent=5 // pred_check_branch
      %252 = sbr.rel (%p250) target = $region44
    $region43: #{wav_unpack_layer.1} parent=5 // pred_region
      // Predicated region
      $region45: #{wav_unpack_layer.1} parent=43 // pred_check
        %p253 = pneg %p34
      $region46: #{wav_unpack_layer.1} parent=43 // pred_check_branch
        %255 = sbr.rel (%p253) target = $region48
      $region47: #{wav_unpack_layer.1} parent=43 // pred_region
        %p256 = scmp.lt.s32.totalorder %s14, 1
        %s257 = scalar_select %p256, %s14, 1
        %s258 = smul.addr %s257, 10
        %s259 = smul.addr %s258, 4
        %s260 = scalar_lea.vmem %s0, %s259
      $region48: #{wav_unpack_layer.1} parent=43 // pred_fallthru
        _
    $region44: #{wav_unpack_layer.1} parent=5 // pred_fallthru
      _
    %p261 = scmp.le.s32.totalorder 1, %s14
    %p262 = scmp.lt.s32.totalorder %s14, 3
    %p263 = pnand %p261, %p262
    %p264 = pneg %p263
    // Predicated region
    $region49: #{wav_unpack_layer.1} parent=5 // pred_check
      _
    $region50: #{wav_unpack_layer.1} parent=5 // pred_check_branch
      %266 = sbr.rel (%p263) target = $region52
    $region51: #{wav_unpack_layer.1} parent=5 // pred_region
      %s267 = ssub.s32 %s14, 1
      %p268 = scmp.lt.s32.totalorder %s19, 1
      %s269 = scalar_select %p268, %s19, 1
      %s270 = smul.addr %s269, 10
      %s271 = smul.addr %s270, 4
      %s272 = scalar_lea.vmem %s0, %s271
      %p273 = pneg %p40
      %p274 = pneg %p37
      %p275 = pneg %p61
      %p276 = pneg %p58
      %p277 = pneg %p82
      %p278 = pneg %p79
      %p279 = pneg %p103
      %p280 = pneg %p100
      %p281 = pneg %p124
      %p282 = pneg %p121
      %p283 = pneg %p145
      %p284 = pneg %p142
      %p285 = pneg %p166
      %p286 = pneg %p163
      %p287 = pneg %p187
      %p288 = pneg %p184
      %p289 = pneg %p213
      %p290 = pneg %p210
      %p291 = scmp.lt.s32.totalorder %s19, 1
      %s292 = scalar_select %p291, %s19, 1
      %s293 = smul.addr %s292, 48
      %s294 = smul.addr %s293, 8
      %s295 = scalar_lea.vmem %s8, %s294
      %p296 = scmp.lt.s32.totalorder %s19, 1
      %s297 = scalar_select %p296, %s19, 1
      %s298 = smul.addr %s297, 10
      %s299 = smul.addr %s298, 4
      %s300 = scalar_lea.vmem %s0, %s299
      %p301 = scmp.lt.s32.totalorder %s19, 1
      %s302 = scalar_select %p301, %s19, 1
      %s303 = smul.addr %s302, 48
      %s304 = smul.addr %s303, 8
      %s305 = scalar_lea.vmem %s8, %s304
      %v307 = vld [vmem:[%s300] sm:$0xff]
      %v308 = vld [vmem:[%s300 + $0x8] sm:$0xff]
      %v309 = vld [vmem:[%s300 + $0x14] sm:$0xff]
      %v310 = vld [vmem:[%s300 + $0x1c] sm:$0xff]
      %315 = vrot.lane.b32.xlu0 %v307, 19
      %v316 = vpop.permute.xlu0 %315
      %317 = vrot.lane.b32.xlu0 %v308, 19
      %v318 = vpop.permute.xlu0 %317
      %319 = vrot.lane.b32.xlu0 %v309, 19
      %v320 = vpop.permute.xlu0 %319
      %321 = vrot.lane.b32.xlu0 %v310, 19
      %v322 = vpop.permute.xlu0 %321
      %v323 = vrot.slane %v316, 4
      %v324 = vrot.slane %v318, 4
      %v325 = vrot.slane %v320, 4
      %v326 = vrot.slane %v322, 4
      %vm327 = vcmask 1043456
      %v328 = vsel %vm327, %v323, %v324
      %vm329 = vcmask 154624
      %v330 = vsel %vm329, %v316, %v328
      %v331 = vsel %vm329, %v318, %v324
      %v332 = vsel %vm327, %v325, %v326
      %v333 = vsel %vm329, %v320, %v332
      %v334 = vsel %vm329, %v322, %v326
      %339 = vst [vmem:[#allocation2] sm:$0xff] %v330
      %340 = vst [vmem:[#allocation2 + $0x8] sm:$0xf] %v331
      %341 = vst [vmem:[#allocation2 + $0xc] sm:$0xff] %v333
      %342 = vst [vmem:[#allocation2 + $0x14] sm:$0xf] %v334
      %v343 = vld [vmem:[%s300] sm:$0xff]
      %v344 = vld [vmem:[%s300 + $0x8] sm:$0xff]
      %v345 = vld [vmem:[%s300 + $0x14] sm:$0xff]
      %v346 = vld [vmem:[%s300 + $0x1c] sm:$0xff]
      %351 = vrot.lane.b32.xlu0 %v343, 18
      %v352 = vpop.permute.xlu0 %351
      %353 = vrot.lane.b32.xlu0 %v344, 18
      %v354 = vpop.permute.xlu0 %353
      %355 = vrot.lane.b32.xlu0 %v345, 18
      %v356 = vpop.permute.xlu0 %355
      %357 = vrot.lane.b32.xlu0 %v346, 18
      %v358 = vpop.permute.xlu0 %357
      %v359 = vrot.slane %v352, 4
      %v360 = vrot.slane %v354, 4
      %v361 = vrot.slane %v356, 4
      %v362 = vrot.slane %v358, 4
      %v363 = vsel %vm327, %v359, %v360
      %vm364 = vcmask 146432
      %v365 = vsel %vm364, %v352, %v363
      %v366 = vsel %vm364, %v354, %v360
      %v367 = vsel %vm327, %v361, %v362
      %v368 = vsel %vm364, %v356, %v367
      %v369 = vsel %vm364, %v358, %v362
      %374 = vst [vmem:[#allocation2 + $0x18] sm:$0xff] %v365
      %375 = vst [vmem:[#allocation2 + $0x20] sm:$0xf] %v366
      %376 = vst [vmem:[#allocation2 + $0x24] sm:$0xff] %v368
      %377 = vst [vmem:[#allocation2 + $0x2c] sm:$0xf] %v369
      %v378 = vld [vmem:[%s300] sm:$0xff]
      %v379 = vld [vmem:[%s300 + $0x8] sm:$0xff]
      %v380 = vld [vmem:[%s300 + $0x14] sm:$0xff]
      %v381 = vld [vmem:[%s300 + $0x1c] sm:$0xff]
      %386 = vrot.lane.b32.xlu0 %v378, 17
      %v387 = vpop.permute.xlu0 %386
      %388 = vrot.lane.b32.xlu0 %v379, 17
      %v389 = vpop.permute.xlu0 %388
      %390 = vrot.lane.b32.xlu0 %v380, 17
      %v391 = vpop.permute.xlu0 %390
      %392 = vrot.lane.b32.xlu0 %v381, 17
      %v393 = vpop.permute.xlu0 %392
      %v394 = vrot.slane %v387, 4
      %v395 = vrot.slane %v389, 4
      %v396 = vrot.slane %v391, 4
      %v397 = vrot.slane %v393, 4
      %v398 = vsel %vm327, %v394, %v395
      %vm399 = vcmask 138240
      %v400 = vsel %vm399, %v387, %v398
      %v401 = vsel %vm399, %v389, %v395
      %v402 = vsel %vm327, %v396, %v397
      %v403 = vsel %vm399, %v391, %v402
      %v404 = vsel %vm399, %v393, %v397
      %409 = vst [vmem:[#allocation2 + $0x30] sm:$0xff] %v400
      %410 = vst [vmem:[#allocation2 + $0x38] sm:$0xf] %v401
      %411 = vst [vmem:[#allocation2 + $0x3c] sm:$0xff] %v403
      %412 = vst [vmem:[#allocation2 + $0x44] sm:$0xf] %v404
      %v413 = vld [vmem:[%s300] sm:$0xff]
      %v414 = vld [vmem:[%s300 + $0x8] sm:$0xff]
      %v415 = vld [vmem:[%s300 + $0x14] sm:$0xff]
      %v416 = vld [vmem:[%s300 + $0x1c] sm:$0xff]
      %421 = vrot.lane.b32.xlu0 %v413, 1
      %v422 = vpop.permute.xlu0 %421
      %423 = vrot.lane.b32.xlu0 %v414, 1
      %v424 = vpop.permute.xlu0 %423
      %425 = vrot.lane.b32.xlu0 %v415, 1
      %v426 = vpop.permute.xlu0 %425
      %427 = vrot.lane.b32.xlu0 %v416, 1
      %v428 = vpop.permute.xlu0 %427
      %v429 = vrot.slane %v422, 4
      %v430 = vrot.slane %v424, 4
      %v431 = vrot.slane %v426, 4
      %v432 = vrot.slane %v428, 4
      %v433 = vsel %vm327, %v429, %v430
      %vm434 = vcmask 7168
      %v435 = vsel %vm434, %v422, %v433
      %v436 = vsel %vm434, %v424, %v430
      %v437 = vsel %vm327, %v431, %v432
      %v438 = vsel %vm434, %v426, %v437
      %v439 = vsel %vm434, %v428, %v432
      %444 = vst [vmem:[#allocation2 + $0x48] sm:$0xff] %v435
      %445 = vst [vmem:[#allocation2 + $0x50] sm:$0xf] %v436
      %446 = vst [vmem:[#allocation2 + $0x54] sm:$0xff] %v438
      %447 = vst [vmem:[#allocation2 + $0x5c] sm:$0xf] %v439
      %v448 = vld [vmem:[%s300 + $0x4] sm:$0xff]
      %v449 = vld [vmem:[%s300 + $0xc] sm:$0xf]
      %v450 = vld [vmem:[%s300 + $0x18] sm:$0xff]
      %v451 = vld [vmem:[%s300 + $0x20] sm:$0xf]
      %452 = vst [vmem:[#allocation2 + $0x60] sm:$0xff] %v448
      %453 = vst [vmem:[#allocation2 + $0x68] sm:$0xf] %v449
      %454 = vst [vmem:[#allocation2 + $0x6c] sm:$0xff] %v450
      %455 = vst [vmem:[#allocation2 + $0x74] sm:$0xf] %v451
      %v456 = vld [vmem:[%s300 + $0x4] sm:$0xff]
      %v457 = vld [vmem:[%s300 + $0xc] sm:$0xff]
      %v458 = vld [vmem:[%s300 + $0x18] sm:$0xff]
      %v459 = vld [vmem:[%s300 + $0x20] sm:$0xff]
      %464 = vrot.lane.b32.xlu0 %v456, 127
      %v465 = vpop.permute.xlu0 %464
      %466 = vrot.lane.b32.xlu0 %v457, 127
      %v467 = vpop.permute.xlu0 %466
      %468 = vrot.lane.b32.xlu0 %v458, 127
      %v469 = vpop.permute.xlu0 %468
      %470 = vrot.lane.b32.xlu0 %v459, 127
      %v471 = vpop.permute.xlu0 %470
      %v472 = vrot.slane %v465, 4
      %v473 = vrot.slane %v467, 4
      %v474 = vrot.slane %v469, 4
      %v475 = vrot.slane %v471, 4
      %v476 = vsel %vm327, %v472, %v473
      %vm477 = vcmask 1039360
      %v478 = vsel %vm477, %v465, %v476
      %v479 = vsel %vm477, %v467, %v473
      %v480 = vsel %vm327, %v474, %v475
      %v481 = vsel %vm477, %v469, %v480
      %v482 = vsel %vm477, %v471, %v475
      %487 = vst [vmem:[#allocation2 + $0x78] sm:$0xff] %v478
      %488 = vst [vmem:[#allocation2 + $0x80] sm:$0xf] %v479
      %489 = vst [vmem:[#allocation2 + $0x84] sm:$0xff] %v481
      %490 = vst [vmem:[#allocation2 + $0x8c] sm:$0xf] %v482
      %v491 = vld [vmem:[%s300 + $0x4] sm:$0xff]
      %v492 = vld [vmem:[%s300 + $0xc] sm:$0xff]
      %v493 = vld [vmem:[%s300 + $0x18] sm:$0xff]
      %v494 = vld [vmem:[%s300 + $0x20] sm:$0xff]
      %499 = vrot.lane.b32.xlu0 %v491, 111
      %v500 = vpop.permute.xlu0 %499
      %501 = vrot.lane.b32.xlu0 %v492, 111
      %v502 = vpop.permute.xlu0 %501
      %503 = vrot.lane.b32.xlu0 %v493, 111
      %v504 = vpop.permute.xlu0 %503
      %505 = vrot.lane.b32.xlu0 %v494, 111
      %v506 = vpop.permute.xlu0 %505
      %v507 = vrot.slane %v500, 4
      %v508 = vrot.slane %v502, 4
      %v509 = vrot.slane %v504, 4
      %v510 = vrot.slane %v506, 4
      %v511 = vsel %vm327, %v507, %v508
      %vm512 = vcmask 908288
      %v513 = vsel %vm512, %v500, %v511
      %v514 = vsel %vm512, %v502, %v508
      %v515 = vsel %vm327, %v509, %v510
      %v516 = vsel %vm512, %v504, %v515
      %v517 = vsel %vm512, %v506, %v510
      %522 = vst [vmem:[#allocation2 + $0x90] sm:$0xff] %v513
      %523 = vst [vmem:[#allocation2 + $0x98] sm:$0xf] %v514
      %524 = vst [vmem:[#allocation2 + $0x9c] sm:$0xff] %v516
      %525 = vst [vmem:[#allocation2 + $0xa4] sm:$0xf] %v517
      %v526 = vld [vmem:[%s300 + $0x4] sm:$0xff]
      %v527 = vld [vmem:[%s300 + $0xc] sm:$0xff]
      %v528 = vld [vmem:[%s300 + $0x18] sm:$0xff]
      %v529 = vld [vmem:[%s300 + $0x20] sm:$0xff]
      %534 = vrot.lane.b32.xlu0 %v526, 110
      %v535 = vpop.permute.xlu0 %534
      %536 = vrot.lane.b32.xlu0 %v527, 110
      %v537 = vpop.permute.xlu0 %536
      %538 = vrot.lane.b32.xlu0 %v528, 110
      %v539 = vpop.permute.xlu0 %538
      %540 = vrot.lane.b32.xlu0 %v529, 110
      %v541 = vpop.permute.xlu0 %540
      %v542 = vrot.slane %v535, 4
      %v543 = vrot.slane %v537, 4
      %v544 = vrot.slane %v539, 4
      %v545 = vrot.slane %v541, 4
      %v546 = vsel %vm327, %v542, %v543
      %vm547 = vcmask 900096
      %v548 = vsel %vm547, %v535, %v546
      %v549 = vsel %vm547, %v537, %v543
      %v550 = vsel %vm327, %v544, %v545
      %v551 = vsel %vm547, %v539, %v550
      %v552 = vsel %vm547, %v541, %v545
      %557 = vst [vmem:[#allocation2 + $0xa8] sm:$0xff] %v548
      %558 = vst [vmem:[#allocation2 + $0xb0] sm:$0xf] %v549
      %559 = vst [vmem:[#allocation2 + $0xb4] sm:$0xff] %v551
      %560 = vst [vmem:[#allocation2 + $0xbc] sm:$0xf] %v552
      %v561 = vld [vmem:[%s300 + $0x4] sm:$0xff]
      %v562 = vld [vmem:[%s300 + $0xc] sm:$0xff]
      %v563 = vld [vmem:[%s300 + $0x18] sm:$0xff]
      %v564 = vld [vmem:[%s300 + $0x20] sm:$0xff]
      %569 = vrot.lane.b32.xlu0 %v561, 109
      %v570 = vpop.permute.xlu0 %569
      %571 = vrot.lane.b32.xlu0 %v562, 109
      %v572 = vpop.permute.xlu0 %571
      %573 = vrot.lane.b32.xlu0 %v563, 109
      %v574 = vpop.permute.xlu0 %573
      %575 = vrot.lane.b32.xlu0 %v564, 109
      %v576 = vpop.permute.xlu0 %575
      %v577 = vrot.slane %v570, 4
      %v578 = vrot.slane %v572, 4
      %v579 = vrot.slane %v574, 4
      %v580 = vrot.slane %v576, 4
      %v581 = vsel %vm327, %v577, %v578
      %vm582 = vcmask 891904
      %v583 = vsel %vm582, %v570, %v581
      %v584 = vsel %vm582, %v572, %v578
      %v585 = vsel %vm327, %v579, %v580
      %v586 = vsel %vm582, %v574, %v585
      %v587 = vsel %vm582, %v576, %v580
      %592 = vst [vmem:[#allocation2 + $0xc0] sm:$0xff] %v583
      %593 = vst [vmem:[#allocation2 + $0xc8] sm:$0xf] %v584
      %594 = vst [vmem:[#allocation2 + $0xcc] sm:$0xff] %v586
      %595 = vst [vmem:[#allocation2 + $0xd4] sm:$0xf] %v587
      %v596 = vld [vmem:[%s1] sm:$0xff]
      %v597 = vld [vmem:[%s1 + $0x8] sm:$0xff]
      %v598 = vld [vmem:[#allocation2] sm:$0xff]
      %v599 = vld [vmem:[#allocation2 + $0x8] sm:$0xf]
      %v600 = vld [vmem:[#allocation2 + $0xc] sm:$0xff]
      %v601 = vld [vmem:[#allocation2 + $0x14] sm:$0xf]
      %v602 = vld [vmem:[#allocation2 + $0x18] sm:$0xff]
      %v603 = vld [vmem:[#allocation2 + $0x20] sm:$0xf]
      %v604 = vld [vmem:[#allocation2 + $0x24] sm:$0xff]
      %v605 = vld [vmem:[#allocation2 + $0x2c] sm:$0xf]
      %v606 = vld [vmem:[#allocation2 + $0x30] sm:$0xff]
      %v607 = vld [vmem:[#allocation2 + $0x38] sm:$0xf]
      %v608 = vld [vmem:[#allocation2 + $0x3c] sm:$0xff]
      %v609 = vld [vmem:[#allocation2 + $0x44] sm:$0xf]
      %v610 = vld [vmem:[#allocation2 + $0x48] sm:$0xff]
      %v611 = vld [vmem:[#allocation2 + $0x50] sm:$0xf]
      %v612 = vld [vmem:[#allocation2 + $0x54] sm:$0xff]
      %v613 = vld [vmem:[#allocation2 + $0x5c] sm:$0xf]
      %v614 = vld [vmem:[#allocation2 + $0x60] sm:$0xff]
      %v615 = vld [vmem:[#allocation2 + $0x68] sm:$0xf]
      %v616 = vld [vmem:[#allocation2 + $0x6c] sm:$0xff]
      %v617 = vld [vmem:[#allocation2 + $0x74] sm:$0xf]
      %v618 = vld [vmem:[#allocation2 + $0x78] sm:$0xff]
      %v619 = vld [vmem:[#allocation2 + $0x80] sm:$0xf]
      %v620 = vld [vmem:[#allocation2 + $0x84] sm:$0xff]
      %v621 = vld [vmem:[#allocation2 + $0x8c] sm:$0xf]
      %v622 = vld [vmem:[#allocation2 + $0x90] sm:$0xff]
      %v623 = vld [vmem:[#allocation2 + $0x98] sm:$0xf]
      %v624 = vld [vmem:[#allocation2 + $0x9c] sm:$0xff]
      %v625 = vld [vmem:[#allocation2 + $0xa4] sm:$0xf]
      %v626 = vld [vmem:[#allocation2 + $0xa8] sm:$0xff]
      %v627 = vld [vmem:[#allocation2 + $0xb0] sm:$0xf]
      %v628 = vld [vmem:[#allocation2 + $0xb4] sm:$0xff]
      %v629 = vld [vmem:[#allocation2 + $0xbc] sm:$0xf]
      %v630 = vld [vmem:[#allocation2 + $0xc0] sm:$0xff]
      %v631 = vld [vmem:[#allocation2 + $0xc8] sm:$0xf]
      %v632 = vld [vmem:[#allocation2 + $0xcc] sm:$0xff]
      %v633 = vld [vmem:[#allocation2 + $0xd4] sm:$0xf]
      %v636 = vunpack.c.l.b16 %v596
      %v637 = vunpack.c.h.b16 %v596
      %v638 = vunpack.c.l.b16 %v597
      %v639 = vunpack.c.h.b16 %v597
      %v640 = vpack.c.b16 %v638, %v636
      %v641 = vpack.c.b16 %v639, %v637
      %v679 = vunpack.c.l.b16 %v598
      %v680 = vunpack.c.h.b16 %v598
      %v681 = vunpack.c.l.b16 %v599
      %v682 = vunpack.c.l.b16 %v600
      %v683 = vunpack.c.h.b16 %v600
      %v684 = vunpack.c.l.b16 %v601
      %v685 = vunpack.c.l.b16 %v602
      %v686 = vunpack.c.h.b16 %v602
      %v687 = vunpack.c.l.b16 %v603
      %v688 = vunpack.c.l.b16 %v604
      %v689 = vunpack.c.h.b16 %v604
      %v690 = vunpack.c.l.b16 %v605
      %v691 = vunpack.c.l.b16 %v606
      %v692 = vunpack.c.h.b16 %v606
      %v693 = vunpack.c.l.b16 %v607
      %v694 = vunpack.c.l.b16 %v608
      %v695 = vunpack.c.h.b16 %v608
      %v696 = vunpack.c.l.b16 %v609
      %v697 = vunpack.c.l.b16 %v610
      %v698 = vunpack.c.h.b16 %v610
      %v699 = vunpack.c.l.b16 %v611
      %v700 = vunpack.c.l.b16 %v612
      %v701 = vunpack.c.h.b16 %v612
      %v702 = vunpack.c.l.b16 %v613
      %v703 = vunpack.c.l.b16 %v614
      %v704 = vunpack.c.h.b16 %v614
      %v705 = vunpack.c.l.b16 %v615
      %v706 = vunpack.c.l.b16 %v616
      %v707 = vunpack.c.h.b16 %v616
      %v708 = vunpack.c.l.b16 %v617
      %v709 = vunpack.c.l.b16 %v618
      %v710 = vunpack.c.h.b16 %v618
      %v711 = vunpack.c.l.b16 %v619
      %v712 = vunpack.c.l.b16 %v620
      %v713 = vunpack.c.h.b16 %v620
      %v714 = vunpack.c.l.b16 %v621
      %v715 = vunpack.c.l.b16 %v622
      %v716 = vunpack.c.h.b16 %v622
      %v717 = vunpack.c.l.b16 %v623
      %v718 = vunpack.c.l.b16 %v624
      %v719 = vunpack.c.h.b16 %v624
      %v720 = vunpack.c.l.b16 %v625
      %v721 = vunpack.c.l.b16 %v626
      %v722 = vunpack.c.h.b16 %v626
      %v723 = vunpack.c.l.b16 %v627
      %v724 = vunpack.c.l.b16 %v628
      %v725 = vunpack.c.h.b16 %v628
      %v726 = vunpack.c.l.b16 %v629
      %v727 = vunpack.c.l.b16 %v630
      %v728 = vunpack.c.h.b16 %v630
      %v729 = vunpack.c.l.b16 %v631
      %v730 = vunpack.c.l.b16 %v632
      %v731 = vunpack.c.h.b16 %v632
      %v732 = vunpack.c.l.b16 %v633
      %v733 = vpack.c.b16 %v682, %v679
      %v734 = vpack.c.b16 %v683, %v680
      %v735 = vpack.c.b16 %v684, %v681
      %v736 = vpack.c.b16 %v688, %v685
      %v737 = vpack.c.b16 %v689, %v686
      %v738 = vpack.c.b16 %v690, %v687
      %v739 = vpack.c.b16 %v694, %v691
      %v740 = vpack.c.b16 %v695, %v692
      %v741 = vpack.c.b16 %v696, %v693
      %v742 = vpack.c.b16 %v700, %v697
      %v743 = vpack.c.b16 %v701, %v698
      %v744 = vpack.c.b16 %v702, %v699
      %v745 = vpack.c.b16 %v706, %v703
      %v746 = vpack.c.b16 %v707, %v704
      %v747 = vpack.c.b16 %v708, %v705
      %v748 = vpack.c.b16 %v712, %v709
      %v749 = vpack.c.b16 %v713, %v710
      %v750 = vpack.c.b16 %v714, %v711
      %v751 = vpack.c.b16 %v718, %v715
      %v752 = vpack.c.b16 %v719, %v716
      %v753 = vpack.c.b16 %v720, %v717
      %v754 = vpack.c.b16 %v724, %v721
      %v755 = vpack.c.b16 %v725, %v722
      %v756 = vpack.c.b16 %v726, %v723
      %v757 = vpack.c.b16 %v730, %v727
      %v758 = vpack.c.b16 %v731, %v728
      %v759 = vpack.c.b16 %v732, %v729
      %vm787 = vcmask 130048
      %v789 = vsel %vm787, %v641, 0
      %791 = vmatprep.subr.bf16.mxu0 %v755
      %792 = vmatpush1.bf16.msra.mxu0 %v754
      %793 = vmatprep.subr.bf16.mxu0 %v752
      %794 = vmatpush1.bf16.msra.mxu0 %v751
      %795 = vmatprep.subr.bf16.mxu0 %v749
      %796 = vmatpush1.bf16.msra.mxu0 %v748
      %797 = vmatprep.subr.bf16.mxu0 %v746
      %798 = vmatpush1.bf16.msra.mxu0 %v745
      %799 = vmatprep.subr.bf16.mxu0 %v743
      %800 = vmatpush1.bf16.msra.mxu0 %v742
      %801 = vmatprep.subr.bf16.mxu0 %v740
      %802 = vmatpush1.bf16.msra.mxu0 %v739
      %803 = vmatprep.subr.bf16.mxu0 %v737
      %804 = vmatpush1.bf16.msra.mxu0 %v736
      %805 = vmatprep.subr.bf16.mxu0 %v734
      %806 = vmatpush1.bf16.msra.mxu0 %v733
      %807 = vmatprep.subr.bf16.mxu0 0
      %808 = vmatpush2.bf16.msra.mxu0 0
      %809 = vmatprep.subr.bf16.mxu0 0
      %810 = vmatpush2.bf16.msra.mxu0 0
      %811 = vmatprep.subr.bf16.mxu0 0
      %812 = vmatpush2.bf16.msra.mxu0 0
      %813 = vmatprep.subr.bf16.mxu0 0
      %814 = vmatpush2.bf16.msra.mxu0 0
      %815 = vmatprep.subr.bf16.mxu0 0
      %816 = vmatpush2.bf16.msra.mxu0 0
      %817 = vmatprep.subr.bf16.mxu0 0
      %818 = vmatpush2.bf16.msra.mxu0 0
      %819 = vmatprep.subr.bf16.mxu0 0
      %820 = vmatpush2.bf16.msra.mxu0 0
      %821 = vmatprep.subr.bf16.mxu0 %v758
      %822 = vmatpush2.bf16.msra.mxu0 %v757
      %823 = vmatprep.mubr.bf16.mxu0 %v789
      %824 = vmatmul.mubr.bf16.gmra.mxu0 %v640
      %v825 = vpop.f32.mrf.mxu0
      %v826 = vadd.f32 0.0, %v825
      %v827 = vpop.f32.mrf.mxu0
      %v828 = vadd.f32 0.0, %v827
      %v829 = vpop.f32.mrf.mxu0
      %v830 = vadd.f32 0.0, %v829
      %v831 = vpop.f32.mrf.mxu0
      %v832 = vadd.f32 0.0, %v831
      %833 = vdwg.mxu0
      %834 = vmatprep.subr.bf16.mxu0 0
      %835 = vmatpush1.bf16.msra.mxu0 %v756
      %836 = vmatprep.subr.bf16.mxu0 0
      %837 = vmatpush1.bf16.msra.mxu0 %v753
      %838 = vmatprep.subr.bf16.mxu0 0
      %839 = vmatpush1.bf16.msra.mxu0 %v750
      %840 = vmatprep.subr.bf16.mxu0 0
      %841 = vmatpush1.bf16.msra.mxu0 %v747
      %842 = vmatprep.subr.bf16.mxu0 0
      %843 = vmatpush1.bf16.msra.mxu0 %v744
      %844 = vmatprep.subr.bf16.mxu0 0
      %845 = vmatpush1.bf16.msra.mxu0 %v741
      %846 = vmatprep.subr.bf16.mxu0 0
      %847 = vmatpush1.bf16.msra.mxu0 %v738
      %848 = vmatprep.subr.bf16.mxu0 0
      %849 = vmatpush1.bf16.msra.mxu0 %v735
      %850 = vmatprep.subr.bf16.mxu0 0
      %851 = vmatpush2.bf16.msra.mxu0 0
      %852 = vmatprep.subr.bf16.mxu0 0
      %853 = vmatpush2.bf16.msra.mxu0 0
      %854 = vmatprep.subr.bf16.mxu0 0
      %855 = vmatpush2.bf16.msra.mxu0 0
      %856 = vmatprep.subr.bf16.mxu0 0
      %857 = vmatpush2.bf16.msra.mxu0 0
      %858 = vmatprep.subr.bf16.mxu0 0
      %859 = vmatpush2.bf16.msra.mxu0 0
      %860 = vmatprep.subr.bf16.mxu0 0
      %861 = vmatpush2.bf16.msra.mxu0 0
      %862 = vmatprep.subr.bf16.mxu0 0
      %863 = vmatpush2.bf16.msra.mxu0 0
      %864 = vmatprep.subr.bf16.mxu0 0
      %865 = vmatpush2.bf16.msra.mxu0 %v759
      %866 = vmatprep.mubr.bf16.mxu0 %v789
      %867 = vmatmul.mubr.bf16.gmra.mxu0 %v640
      %v868 = vpop.f32.mrf.mxu0
      %v869 = vadd.f32 0.0, %v868
      %v870 = vpop.f32.mrf.mxu0
      %v871 = vpop.f32.mrf.mxu0
      %v872 = vadd.f32 0.0, %v871
      %v873 = vpop.f32.mrf.mxu0
      %874 = vdwg.mxu0
      %v875 = vld [vmem:[%s5] sm:$0x7]
      %v877 = vlaneseq
      %v878 = vshrl.u32 %v877, 7
      %v879 = vsub.s32 0, %v878
      %v880 = vrot.slane %v875, %v879
      %v881 = vlaneseq
      %v882 = vshrl.u32 %v881, 7
      %v883 = vsub.s32 1, %v882
      %v884 = vrot.slane %v875, %v883
      %v885 = vlaneseq
      %v886 = vshrl.u32 %v885, 7
      %v887 = vsub.s32 2, %v886
      %v888 = vrot.slane %v875, %v887
      %v892 = vmul.f32 %v826, %v880
      %v893 = vmul.f32 %v828, %v884
      %v894 = vmul.f32 %v869, %v888
      %v895 = vmul.f32 %v830, %v880
      %v896 = vmul.f32 %v832, %v884
      %v897 = vmul.f32 %v872, %v888
      %v898 = vadd.f32 %v892, %v893
      %v899 = vadd.f32 %v898, %v894
      %900 = vadd.xlane.f32.xlu0 %v899
      %v901 = vpop.xlane.xlu0 %900
      %v902 = vadd.f32 %v895, %v896
      %v903 = vadd.f32 %v902, %v897
      %904 = vadd.xlane.f32.xlu0 %v903
      %v905 = vpop.xlane.xlu0 %904
      %v906 = vmul.f32 %v892, %v826
      %v907 = vmul.f32 %v893, %v828
      %v908 = vmul.f32 %v894, %v869
      %v909 = vmul.f32 %v895, %v830
      %v910 = vmul.f32 %v896, %v832
      %v911 = vmul.f32 %v897, %v872
      %v912 = vadd.f32 %v906, %v907
      %v913 = vadd.f32 %v912, %v908
      %914 = vadd.xlane.f32.xlu0 %v913
      %v915 = vpop.xlane.xlu0 %914
      %v916 = vadd.f32 %v909, %v910
      %v917 = vadd.f32 %v916, %v911
      %918 = vadd.xlane.f32.xlu0 %v917
      %v919 = vpop.xlane.xlu0 %918
      %v920 = vld [vmem:[%s2] sm:$0xff]
      %v921 = vld [vmem:[%s2 + $0x8] sm:$0xff]
      %v922 = vmul.f32 %v920, 256.0
      %v923 = vmul.f32 %v921, 256.0
      %v924 = vadd.f32 %v901, %v922
      %v925 = vadd.f32 %v905, %v923
      %v926 = vmul.f32 %v920, 2.0
      %v927 = vmul.f32 %v921, 2.0
      %v928 = vmul.f32 %v926, %v901
      %v929 = vmul.f32 %v927, %v905
      %v930 = vadd.f32 %v915, %v928
      %v931 = vadd.f32 %v919, %v929
      %v932 = vmul.f32 %v920, %v920
      %v933 = vmul.f32 %v921, %v921
      %v934 = vmul.f32 %v932, 256.0
      %v935 = vmul.f32 %v933, 256.0
      %v936 = vadd.f32 %v930, %v934
      %v937 = vadd.f32 %v931, %v935
      %v938 = vmul.f32 %v924, 0.00390625
      %v939 = vmul.f32 %v925, 0.00390625
      %v940 = vmul.f32 %v936, 0.00390625
      %v941 = vmul.f32 %v937, 0.00390625
      %v942 = vmul.f32 %v938, %v938
      %v943 = vmul.f32 %v939, %v939
      %v944 = vsub.f32 %v940, %v942
      %v945 = vsub.f32 %v941, %v943
      %v946 = vmax.f32 %v944, 0.0
      %v947 = vmax.f32 %v945, 0.0
      %v948 = vld [vmem:[%s3] sm:$0xff]
      %v949 = vld [vmem:[%s3 + $0x8] sm:$0xff]
      %v950 = vadd.f32 %v946, 1e-05
      %v951 = vadd.f32 %v947, 1e-05
      %v952 = vrsqrt.pop %v950
      %v953 = vrsqrt.pop %v951
      %v954 = vmul.f32 %v948, %v952
      %v955 = vmul.f32 %v949, %v953
      %v956 = vld [vmem:[%s4] sm:$0xff]
      %v957 = vld [vmem:[%s4 + $0x8] sm:$0xff]
      %v958 = vsub.f32 %v920, %v938
      %v959 = vsub.f32 %v921, %v939
      %v960 = vmul.f32 %v958, %v954
      %v961 = vmul.f32 %v959, %v955
      %v962 = vadd.f32 %v956, %v960
      %v963 = vadd.f32 %v957, %v961
      %965 = vset.pattern.permute.xlu0 0
      %966 = vperm.xlu0 %965, %v954
      %v967 = vpop.permute.xlu0 %966
      %970 = vset.pattern.permute.xlu0 0
      %971 = vperm.xlu0 %970, %v955
      %v972 = vpop.permute.xlu0 %971
      %v974 = vmul.f32 %v826, %v967
      %v975 = vmul.f32 %v828, %v967
      %v976 = vmul.f32 %v869, %v967
      %v977 = vmul.f32 %v830, %v972
      %v978 = vmul.f32 %v832, %v972
      %v979 = vmul.f32 %v872, %v972
      %981 = vset.pattern.permute.xlu0 0
      %982 = vperm.xlu0 %981, %v962
      %v983 = vpop.permute.xlu0 %982
      %986 = vset.pattern.permute.xlu0 0
      %987 = vperm.xlu0 %986, %v963
      %v988 = vpop.permute.xlu0 %987
      %v990 = vadd.f32 %v974, %v983
      %v991 = vadd.f32 %v975, %v983
      %v992 = vadd.f32 %v976, %v983
      %v993 = vadd.f32 %v977, %v988
      %v994 = vadd.f32 %v978, %v988
      %v995 = vadd.f32 %v979, %v988
      %vm996 = vcmp.gt.f32.partialorder %v990, 0.0
      %vm997 = vcmp.gt.f32.partialorder %v991, 0.0
      %vm998 = vcmp.gt.f32.partialorder %v992, 0.0
      %vm999 = vcmp.gt.f32.partialorder %v993, 0.0
      %vm1000 = vcmp.gt.f32.partialorder %v994, 0.0
      %vm1001 = vcmp.gt.f32.partialorder %v995, 0.0
      %v1002 = vmin.f32 %v990, 0.0
      %v1003 = vmin.f32 %v991, 0.0
      %v1004 = vmin.f32 %v992, 0.0
      %v1005 = vmin.f32 %v993, 0.0
      %v1006 = vmin.f32 %v994, 0.0
      %v1007 = vmin.f32 %v995, 0.0
      %v1008 = vmul.f32 %v1002, 1.442695
      %v1009 = vpow.pop %v1008
      %v1010 = vmul.f32 %v1003, 1.442695
      %v1011 = vpow.pop %v1010
      %v1012 = vmul.f32 %v1004, 1.442695
      %v1013 = vpow.pop %v1012
      %v1014 = vmul.f32 %v1005, 1.442695
      %v1015 = vpow.pop %v1014
      %v1016 = vmul.f32 %v1006, 1.442695
      %v1017 = vpow.pop %v1016
      %v1018 = vmul.f32 %v1007, 1.442695
      %v1019 = vpow.pop %v1018
      %v1020 = vsub.f32 %v1009, 1.0
      %v1021 = vsub.f32 %v1011, 1.0
      %v1022 = vsub.f32 %v1013, 1.0
      %v1023 = vsub.f32 %v1015, 1.0
      %v1024 = vsub.f32 %v1017, 1.0
      %v1025 = vsub.f32 %v1019, 1.0
      %v1026 = vsel %vm996, %v990, %v1020
      %v1027 = vsel %vm997, %v991, %v1021
      %v1028 = vsel %vm998, %v992, %v1022
      %v1029 = vsel %vm999, %v993, %v1023
      %v1030 = vsel %vm1000, %v994, %v1024
      %v1031 = vsel %vm1001, %v995, %v1025
      %v1032 = vmul.f32 %v1026, %v880
      %v1033 = vmul.f32 %v1027, %v884
      %v1034 = vmul.f32 %v1028, %v888
      %v1035 = vmul.f32 %v1029, %v880
      %v1036 = vmul.f32 %v1030, %v884
      %v1037 = vmul.f32 %v1031, %v888
      %v1038 = vpack.c.bf16 %v1035, %v1032
      %v1039 = vpack.c.bf16 %v1036, %v1033
      %v1040 = vpack.c.bf16 %v1037, %v1034
      %1041 = vst [vmem:[#allocation3] sm:$0xf] 0
      %1042 = vst [vmem:[#allocation3 + $0x14] sm:$0xf] 0
      %1043 = vst [vmem:[#allocation3 + $0x10] sm:$0xf] 0
      %1044 = vst [vmem:[#allocation3 + $0x24] sm:$0xf] 0
      %v1048 = vunpack.c.l.b16 %v1038
      %v1049 = vunpack.c.l.b16 %v1039
      %v1050 = vunpack.c.l.b16 %v1040
      %v1051 = vunpack.c.h.b16 %v1038
      %v1052 = vunpack.c.h.b16 %v1039
      %v1053 = vunpack.c.h.b16 %v1040
      %v1054 = vpack.c.b16 %v1049, %v1048
      %v1055 = vpack.c.b16 %v1050, %v1050
      %v1056 = vpack.c.b16 %v1052, %v1051
      %v1057 = vpack.c.b16 %v1053, %v1053
      %1062 = vst [vmem:[#allocation3 + $0x4] sm:$0xff] %v1054
      %1063 = vst [vmem:[#allocation3 + $0xc] sm:$0xf] %v1055
      %1064 = vst [vmem:[#allocation3 + $0x18] sm:$0xff] %v1056
      %1065 = vst [vmem:[#allocation3 + $0x20] sm:$0xf] %v1057
      %v1066 = vld [vmem:[#allocation3] sm:$0xff]
      %v1067 = vld [vmem:[#allocation3 + $0x8] sm:$0xff]
      %v1068 = vld [vmem:[#allocation3 + $0x14] sm:$0xff]
      %v1069 = vld [vmem:[#allocation3 + $0x1c] sm:$0xff]
      %1074 = vrot.lane.b32.xlu0 %v1066, 19
      %v1075 = vpop.permute.xlu0 %1074
      %1076 = vrot.lane.b32.xlu0 %v1067, 19
      %v1077 = vpop.permute.xlu0 %1076
      %1078 = vrot.lane.b32.xlu0 %v1068, 19
      %v1079 = vpop.permute.xlu0 %1078
      %1080 = vrot.lane.b32.xlu0 %v1069, 19
      %v1081 = vpop.permute.xlu0 %1080
      %v1082 = vrot.slane %v1075, 4
      %v1083 = vrot.slane %v1077, 4
      %v1084 = vrot.slane %v1079, 4
      %v1085 = vrot.slane %v1081, 4
      %v1086 = vsel %vm327, %v1082, %v1083
      %v1087 = vsel %vm329, %v1075, %v1086
      %v1088 = vsel %vm329, %v1077, %v1083
      %v1089 = vsel %vm327, %v1084, %v1085
      %v1090 = vsel %vm329, %v1079, %v1089
      %v1091 = vsel %vm329, %v1081, %v1085
      %1096 = vst [vmem:[#allocation4] sm:$0xff] %v1087
      %1097 = vst [vmem:[#allocation4 + $0x8] sm:$0xf] %v1088
      %1098 = vst [vmem:[#allocation4 + $0xc] sm:$0xff] %v1090
      %1099 = vst [vmem:[#allocation4 + $0x14] sm:$0xf] %v1091
      %v1100 = vld [vmem:[#allocation3] sm:$0xff]
      %v1101 = vld [vmem:[#allocation3 + $0x8] sm:$0xff]
      %v1102 = vld [vmem:[#allocation3 + $0x14] sm:$0xff]
      %v1103 = vld [vmem:[#allocation3 + $0x1c] sm:$0xff]
      %1108 = vrot.lane.b32.xlu0 %v1100, 18
      %v1109 = vpop.permute.xlu0 %1108
      %1110 = vrot.lane.b32.xlu0 %v1101, 18
      %v1111 = vpop.permute.xlu0 %1110
      %1112 = vrot.lane.b32.xlu0 %v1102, 18
      %v1113 = vpop.permute.xlu0 %1112
      %1114 = vrot.lane.b32.xlu0 %v1103, 18
      %v1115 = vpop.permute.xlu0 %1114
      %v1116 = vrot.slane %v1109, 4
      %v1117 = vrot.slane %v1111, 4
      %v1118 = vrot.slane %v1113, 4
      %v1119 = vrot.slane %v1115, 4
      %v1120 = vsel %vm327, %v1116, %v1117
      %v1121 = vsel %vm364, %v1109, %v1120
      %v1122 = vsel %vm364, %v1111, %v1117
      %v1123 = vsel %vm327, %v1118, %v1119
      %v1124 = vsel %vm364, %v1113, %v1123
      %v1125 = vsel %vm364, %v1115, %v1119
      %1130 = vst [vmem:[#allocation4 + $0x18] sm:$0xff] %v1121
      %1131 = vst [vmem:[#allocation4 + $0x20] sm:$0xf] %v1122
      %1132 = vst [vmem:[#allocation4 + $0x24] sm:$0xff] %v1124
      %1133 = vst [vmem:[#allocation4 + $0x2c] sm:$0xf] %v1125
      %v1134 = vld [vmem:[#allocation3] sm:$0xff]
      %v1135 = vld [vmem:[#allocation3 + $0x8] sm:$0xff]
      %v1136 = vld [vmem:[#allocation3 + $0x14] sm:$0xff]
      %v1137 = vld [vmem:[#allocation3 + $0x1c] sm:$0xff]
      %1142 = vrot.lane.b32.xlu0 %v1134, 17
      %v1143 = vpop.permute.xlu0 %1142
      %1144 = vrot.lane.b32.xlu0 %v1135, 17
      %v1145 = vpop.permute.xlu0 %1144
      %1146 = vrot.lane.b32.xlu0 %v1136, 17
      %v1147 = vpop.permute.xlu0 %1146
      %1148 = vrot.lane.b32.xlu0 %v1137, 17
      %v1149 = vpop.permute.xlu0 %1148
      %v1150 = vrot.slane %v1143, 4
      %v1151 = vrot.slane %v1145, 4
      %v1152 = vrot.slane %v1147, 4
      %v1153 = vrot.slane %v1149, 4
      %v1154 = vsel %vm327, %v1150, %v1151
      %v1155 = vsel %vm399, %v1143, %v1154
      %v1156 = vsel %vm399, %v1145, %v1151
      %v1157 = vsel %vm327, %v1152, %v1153
      %v1158 = vsel %vm399, %v1147, %v1157
      %v1159 = vsel %vm399, %v1149, %v1153
      %1164 = vst [vmem:[#allocation4 + $0x30] sm:$0xff] %v1155
      %1165 = vst [vmem:[#allocation4 + $0x38] sm:$0xf] %v1156
      %1166 = vst [vmem:[#allocation4 + $0x3c] sm:$0xff] %v1158
      %1167 = vst [vmem:[#allocation4 + $0x44] sm:$0xf] %v1159
      %v1168 = vld [vmem:[#allocation3] sm:$0xff]
      %v1169 = vld [vmem:[#allocation3 + $0x8] sm:$0xff]
      %v1170 = vld [vmem:[#allocation3 + $0x14] sm:$0xff]
      %v1171 = vld [vmem:[#allocation3 + $0x1c] sm:$0xff]
      %1176 = vrot.lane.b32.xlu0 %v1168, 1
      %v1177 = vpop.permute.xlu0 %1176
      %1178 = vrot.lane.b32.xlu0 %v1169, 1
      %v1179 = vpop.permute.xlu0 %1178
      %1180 = vrot.lane.b32.xlu0 %v1170, 1
      %v1181 = vpop.permute.xlu0 %1180
      %1182 = vrot.lane.b32.xlu0 %v1171, 1
      %v1183 = vpop.permute.xlu0 %1182
      %v1184 = vrot.slane %v1177, 4
      %v1185 = vrot.slane %v1179, 4
      %v1186 = vrot.slane %v1181, 4
      %v1187 = vrot.slane %v1183, 4
      %v1188 = vsel %vm327, %v1184, %v1185
      %v1189 = vsel %vm434, %v1177, %v1188
      %v1190 = vsel %vm434, %v1179, %v1185
      %v1191 = vsel %vm327, %v1186, %v1187
      %v1192 = vsel %vm434, %v1181, %v1191
      %v1193 = vsel %vm434, %v1183, %v1187
      %1198 = vst [vmem:[#allocation4 + $0x48] sm:$0xff] %v1189
      %1199 = vst [vmem:[#allocation4 + $0x50] sm:$0xf] %v1190
      %1200 = vst [vmem:[#allocation4 + $0x54] sm:$0xff] %v1192
      %1201 = vst [vmem:[#allocation4 + $0x5c] sm:$0xf] %v1193
      %v1202 = vld [vmem:[#allocation3 + $0x4] sm:$0xff]
      %v1203 = vld [vmem:[#allocation3 + $0xc] sm:$0xf]
      %v1204 = vld [vmem:[#allocation3 + $0x18] sm:$0xff]
      %v1205 = vld [vmem:[#allocation3 + $0x20] sm:$0xf]
      %1206 = vst [vmem:[#allocation4 + $0x60] sm:$0xff] %v1202
      %1207 = vst [vmem:[#allocation4 + $0x68] sm:$0xf] %v1203
      %1208 = vst [vmem:[#allocation4 + $0x6c] sm:$0xff] %v1204
      %1209 = vst [vmem:[#allocation4 + $0x74] sm:$0xf] %v1205
      %v1210 = vld [vmem:[#allocation3 + $0x4] sm:$0xff]
      %v1211 = vld [vmem:[#allocation3 + $0xc] sm:$0xff]
      %v1212 = vld [vmem:[#allocation3 + $0x18] sm:$0xff]
      %v1213 = vld [vmem:[#allocation3 + $0x20] sm:$0xff]
      %1218 = vrot.lane.b32.xlu0 %v1210, 127
      %v1219 = vpop.permute.xlu0 %1218
      %1220 = vrot.lane.b32.xlu0 %v1211, 127
      %v1221 = vpop.permute.xlu0 %1220
      %1222 = vrot.lane.b32.xlu0 %v1212, 127
      %v1223 = vpop.permute.xlu0 %1222
      %1224 = vrot.lane.b32.xlu0 %v1213, 127
      %v1225 = vpop.permute.xlu0 %1224
      %v1226 = vrot.slane %v1219, 4
      %v1227 = vrot.slane %v1221, 4
      %v1228 = vrot.slane %v1223, 4
      %v1229 = vrot.slane %v1225, 4
      %v1230 = vsel %vm327, %v1226, %v1227
      %v1231 = vsel %vm477, %v1219, %v1230
      %v1232 = vsel %vm477, %v1221, %v1227
      %v1233 = vsel %vm327, %v1228, %v1229
      %v1234 = vsel %vm477, %v1223, %v1233
      %v1235 = vsel %vm477, %v1225, %v1229
      %1240 = vst [vmem:[#allocation4 + $0x78] sm:$0xff] %v1231
      %1241 = vst [vmem:[#allocation4 + $0x80] sm:$0xf] %v1232
      %1242 = vst [vmem:[#allocation4 + $0x84] sm:$0xff] %v1234
      %1243 = vst [vmem:[#allocation4 + $0x8c] sm:$0xf] %v1235
      %v1244 = vld [vmem:[#allocation3 + $0x4] sm:$0xff]
      %v1245 = vld [vmem:[#allocation3 + $0xc] sm:$0xff]
      %v1246 = vld [vmem:[#allocation3 + $0x18] sm:$0xff]
      %v1247 = vld [vmem:[#allocation3 + $0x20] sm:$0xff]
      %1252 = vrot.lane.b32.xlu0 %v1244, 111
      %v1253 = vpop.permute.xlu0 %1252
      %1254 = vrot.lane.b32.xlu0 %v1245, 111
      %v1255 = vpop.permute.xlu0 %1254
      %1256 = vrot.lane.b32.xlu0 %v1246, 111
      %v1257 = vpop.permute.xlu0 %1256
      %1258 = vrot.lane.b32.xlu0 %v1247, 111
      %v1259 = vpop.permute.xlu0 %1258
      %v1260 = vrot.slane %v1253, 4
      %v1261 = vrot.slane %v1255, 4
      %v1262 = vrot.slane %v1257, 4
      %v1263 = vrot.slane %v1259, 4
      %v1264 = vsel %vm327, %v1260, %v1261
      %v1265 = vsel %vm512, %v1253, %v1264
      %v1266 = vsel %vm512, %v1255, %v1261
      %v1267 = vsel %vm327, %v1262, %v1263
      %v1268 = vsel %vm512, %v1257, %v1267
      %v1269 = vsel %vm512, %v1259, %v1263
      %1274 = vst [vmem:[#allocation4 + $0x90] sm:$0xff] %v1265
      %1275 = vst [vmem:[#allocation4 + $0x98] sm:$0xf] %v1266
      %1276 = vst [vmem:[#allocation4 + $0x9c] sm:$0xff] %v1268
      %1277 = vst [vmem:[#allocation4 + $0xa4] sm:$0xf] %v1269
      %v1278 = vld [vmem:[#allocation3 + $0x4] sm:$0xff]
      %v1279 = vld [vmem:[#allocation3 + $0xc] sm:$0xff]
      %v1280 = vld [vmem:[#allocation3 + $0x18] sm:$0xff]
      %v1281 = vld [vmem:[#allocation3 + $0x20] sm:$0xff]
      %1286 = vrot.lane.b32.xlu0 %v1278, 110
      %v1287 = vpop.permute.xlu0 %1286
      %1288 = vrot.lane.b32.xlu0 %v1279, 110
      %v1289 = vpop.permute.xlu0 %1288
      %1290 = vrot.lane.b32.xlu0 %v1280, 110
      %v1291 = vpop.permute.xlu0 %1290
      %1292 = vrot.lane.b32.xlu0 %v1281, 110
      %v1293 = vpop.permute.xlu0 %1292
      %v1294 = vrot.slane %v1287, 4
      %v1295 = vrot.slane %v1289, 4
      %v1296 = vrot.slane %v1291, 4
      %v1297 = vrot.slane %v1293, 4
      %v1298 = vsel %vm327, %v1294, %v1295
      %v1299 = vsel %vm547, %v1287, %v1298
      %v1300 = vsel %vm547, %v1289, %v1295
      %v1301 = vsel %vm327, %v1296, %v1297
      %v1302 = vsel %vm547, %v1291, %v1301
      %v1303 = vsel %vm547, %v1293, %v1297
      %1308 = vst [vmem:[#allocation4 + $0xa8] sm:$0xff] %v1299
      %1309 = vst [vmem:[#allocation4 + $0xb0] sm:$0xf] %v1300
      %1310 = vst [vmem:[#allocation4 + $0xb4] sm:$0xff] %v1302
      %1311 = vst [vmem:[#allocation4 + $0xbc] sm:$0xf] %v1303
      %v1312 = vld [vmem:[#allocation3 + $0x4] sm:$0xff]
      %v1313 = vld [vmem:[#allocation3 + $0xc] sm:$0xff]
      %v1314 = vld [vmem:[#allocation3 + $0x18] sm:$0xff]
      %v1315 = vld [vmem:[#allocation3 + $0x20] sm:$0xff]
      %1320 = vrot.lane.b32.xlu0 %v1312, 109
      %v1321 = vpop.permute.xlu0 %1320
      %1322 = vrot.lane.b32.xlu0 %v1313, 109
      %v1323 = vpop.permute.xlu0 %1322
      %1324 = vrot.lane.b32.xlu0 %v1314, 109
      %v1325 = vpop.permute.xlu0 %1324
      %1326 = vrot.lane.b32.xlu0 %v1315, 109
      %v1327 = vpop.permute.xlu0 %1326
      %v1328 = vrot.slane %v1321, 4
      %v1329 = vrot.slane %v1323, 4
      %v1330 = vrot.slane %v1325, 4
      %v1331 = vrot.slane %v1327, 4
      %v1332 = vsel %vm327, %v1328, %v1329
      %v1333 = vsel %vm582, %v1321, %v1332
      %v1334 = vsel %vm582, %v1323, %v1329
      %v1335 = vsel %vm327, %v1330, %v1331
      %v1336 = vsel %vm582, %v1325, %v1335
      %v1337 = vsel %vm582, %v1327, %v1331
      %1342 = vst [vmem:[#allocation4 + $0xc0] sm:$0xff] %v1333
      %1343 = vst [vmem:[#allocation4 + $0xc8] sm:$0xf] %v1334
      %1344 = vst [vmem:[#allocation4 + $0xcc] sm:$0xff] %v1336
      %1345 = vst [vmem:[#allocation4 + $0xd4] sm:$0xf] %v1337
      %v1346 = vld [vmem:[%s6] sm:$0xff]
      %v1347 = vld [vmem:[%s6 + $0x8] sm:$0xff]
      %v1348 = vld [vmem:[%s6 + $0x10] sm:$0xff]
      %v1349 = vld [vmem:[%s6 + $0x18] sm:$0xff]
      %v1350 = vld [vmem:[%s6 + $0x20] sm:$0xff]
      %v1351 = vld [vmem:[%s6 + $0x28] sm:$0xff]
      %v1352 = vld [vmem:[%s6 + $0x30] sm:$0xff]
      %v1353 = vld [vmem:[%s6 + $0x38] sm:$0xff]
      %v1354 = vld [vmem:[%s6 + $0x40] sm:$0xff]
      %v1355 = vld [vmem:[%s6 + $0x48] sm:$0xff]
      %v1356 = vld [vmem:[%s6 + $0x50] sm:$0xff]
      %v1357 = vld [vmem:[%s6 + $0x58] sm:$0xff]
      %v1358 = vld [vmem:[%s6 + $0x60] sm:$0xff]
      %v1359 = vld [vmem:[%s6 + $0x68] sm:$0xff]
      %v1360 = vld [vmem:[%s6 + $0x70] sm:$0xff]
      %v1361 = vld [vmem:[%s6 + $0x78] sm:$0xff]
      %v1362 = vld [vmem:[#allocation4] sm:$0xff]
      %v1363 = vld [vmem:[#allocation4 + $0x8] sm:$0xf]
      %v1364 = vld [vmem:[#allocation4 + $0xc] sm:$0xff]
      %v1365 = vld [vmem:[#allocation4 + $0x14] sm:$0xf]
      %v1366 = vld [vmem:[#allocation4 + $0x18] sm:$0xff]
      %v1367 = vld [vmem:[#allocation4 + $0x20] sm:$0xf]
      %v1368 = vld [vmem:[#allocation4 + $0x24] sm:$0xff]
      %v1369 = vld [vmem:[#allocation4 + $0x2c] sm:$0xf]
      %v1370 = vld [vmem:[#allocation4 + $0x30] sm:$0xff]
      %v1371 = vld [vmem:[#allocation4 + $0x38] sm:$0xf]
      %v1372 = vld [vmem:[#allocation4 + $0x3c] sm:$0xff]
      %v1373 = vld [vmem:[#allocation4 + $0x44] sm:$0xf]
      %v1374 = vld [vmem:[#allocation4 + $0x48] sm:$0xff]
      %v1375 = vld [vmem:[#allocation4 + $0x50] sm:$0xf]
      %v1376 = vld [vmem:[#allocation4 + $0x54] sm:$0xff]
      %v1377 = vld [vmem:[#allocation4 + $0x5c] sm:$0xf]
      %v1378 = vld [vmem:[#allocation4 + $0x60] sm:$0xff]
      %v1379 = vld [vmem:[#allocation4 + $0x68] sm:$0xf]
      %v1380 = vld [vmem:[#allocation4 + $0x6c] sm:$0xff]
      %v1381 = vld [vmem:[#allocation4 + $0x74] sm:$0xf]
      %v1382 = vld [vmem:[#allocation4 + $0x78] sm:$0xff]
      %v1383 = vld [vmem:[#allocation4 + $0x80] sm:$0xf]
      %v1384 = vld [vmem:[#allocation4 + $0x84] sm:$0xff]
      %v1385 = vld [vmem:[#allocation4 + $0x8c] sm:$0xf]
      %v1386 = vld [vmem:[#allocation4 + $0x90] sm:$0xff]
      %v1387 = vld [vmem:[#allocation4 + $0x98] sm:$0xf]
      %v1388 = vld [vmem:[#allocation4 + $0x9c] sm:$0xff]
      %v1389 = vld [vmem:[#allocation4 + $0xa4] sm:$0xf]
      %v1390 = vld [vmem:[#allocation4 + $0xa8] sm:$0xff]
      %v1391 = vld [vmem:[#allocation4 + $0xb0] sm:$0xf]
      %v1392 = vld [vmem:[#allocation4 + $0xb4] sm:$0xff]
      %v1393 = vld [vmem:[#allocation4 + $0xbc] sm:$0xf]
      %v1394 = vld [vmem:[#allocation4 + $0xc0] sm:$0xff]
      %v1395 = vld [vmem:[#allocation4 + $0xc8] sm:$0xf]
      %v1396 = vld [vmem:[#allocation4 + $0xcc] sm:$0xff]
      %v1397 = vld [vmem:[#allocation4 + $0xd4] sm:$0xf]
      %v1398 = vld [vmem:[%s7] sm:$0xff]
      %v1399 = vld [vmem:[%s7 + $0x8] sm:$0xff]
      %v1400 = vld [vmem:[%s7 + $0x10] sm:$0xff]
      %v1401 = vld [vmem:[%s7 + $0x18] sm:$0xff]
      %v1402 = vld [vmem:[%s7 + $0x20] sm:$0xff]
      %v1403 = vld [vmem:[%s7 + $0x28] sm:$0xff]
      %v1404 = vld [vmem:[%s7 + $0x30] sm:$0xff]
      %v1405 = vld [vmem:[%s7 + $0x38] sm:$0xff]
      %v1406 = vld [vmem:[%s7 + $0x40] sm:$0xff]
      %v1407 = vld [vmem:[%s7 + $0x48] sm:$0xff]
      %v1408 = vld [vmem:[%s7 + $0x50] sm:$0xff]
      %v1409 = vld [vmem:[%s7 + $0x58] sm:$0xff]
      %v1410 = vld [vmem:[%s7 + $0x60] sm:$0xff]
      %v1411 = vld [vmem:[%s7 + $0x68] sm:$0xff]
      %v1412 = vld [vmem:[%s7 + $0x70] sm:$0xff]
      %v1413 = vld [vmem:[%s7 + $0x78] sm:$0xff]
      %1415 = vset.pattern.permute.xlu0 0
      %1416 = vperm.xlu0 %1415, %v1398
      %v1417 = vpop.permute.xlu0 %1416
      %1420 = vset.pattern.permute.xlu0 0
      %1421 = vperm.xlu0 %1420, %v1399
      %v1422 = vpop.permute.xlu0 %1421
      %1425 = vset.pattern.permute.xlu0 0
      %1426 = vperm.xlu0 %1425, %v1400
      %v1427 = vpop.permute.xlu0 %1426
      %1430 = vset.pattern.permute.xlu0 0
      %1431 = vperm.xlu0 %1430, %v1401
      %v1432 = vpop.permute.xlu0 %1431
      %1435 = vset.pattern.permute.xlu0 0
      %1436 = vperm.xlu0 %1435, %v1402
      %v1437 = vpop.permute.xlu0 %1436
      %1440 = vset.pattern.permute.xlu0 0
      %1441 = vperm.xlu0 %1440, %v1403
      %v1442 = vpop.permute.xlu0 %1441
      %1445 = vset.pattern.permute.xlu0 0
      %1446 = vperm.xlu0 %1445, %v1404
      %v1447 = vpop.permute.xlu0 %1446
      %1450 = vset.pattern.permute.xlu0 0
      %1451 = vperm.xlu0 %1450, %v1405
      %v1452 = vpop.permute.xlu0 %1451
      %1455 = vset.pattern.permute.xlu0 0
      %1456 = vperm.xlu0 %1455, %v1406
      %v1457 = vpop.permute.xlu0 %1456
      %1460 = vset.pattern.permute.xlu0 0
      %1461 = vperm.xlu0 %1460, %v1407
      %v1462 = vpop.permute.xlu0 %1461
      %1465 = vset.pattern.permute.xlu0 0
      %1466 = vperm.xlu0 %1465, %v1408
      %v1467 = vpop.permute.xlu0 %1466
      %1470 = vset.pattern.permute.xlu0 0
      %1471 = vperm.xlu0 %1470, %v1409
      %v1472 = vpop.permute.xlu0 %1471
      %1475 = vset.pattern.permute.xlu0 0
      %1476 = vperm.xlu0 %1475, %v1410
      %v1477 = vpop.permute.xlu0 %1476
      %1480 = vset.pattern.permute.xlu0 0
      %1481 = vperm.xlu0 %1480, %v1411
      %v1482 = vpop.permute.xlu0 %1481
      %1485 = vset.pattern.permute.xlu0 0
      %1486 = vperm.xlu0 %1485, %v1412
      %v1487 = vpop.permute.xlu0 %1486
      %1490 = vset.pattern.permute.xlu0 0
      %1491 = vperm.xlu0 %1490, %v1413
      %v1492 = vpop.permute.xlu0 %1491
      %v1510 = vunpack.c.l.b16 %v1346
      %v1511 = vunpack.c.h.b16 %v1346
      %v1512 = vunpack.c.l.b16 %v1347
      %v1513 = vunpack.c.h.b16 %v1347
      %v1514 = vunpack.c.l.b16 %v1348
      %v1515 = vunpack.c.h.b16 %v1348
      %v1516 = vunpack.c.l.b16 %v1349
      %v1517 = vunpack.c.h.b16 %v1349
      %v1518 = vunpack.c.l.b16 %v1350
      %v1519 = vunpack.c.h.b16 %v1350
      %v1520 = vunpack.c.l.b16 %v1351
      %v1521 = vunpack.c.h.b16 %v1351
      %v1522 = vunpack.c.l.b16 %v1352
      %v1523 = vunpack.c.h.b16 %v1352
      %v1524 = vunpack.c.l.b16 %v1353
      %v1525 = vunpack.c.h.b16 %v1353
      %v1526 = vunpack.c.l.b16 %v1354
      %v1527 = vunpack.c.h.b16 %v1354
      %v1528 = vunpack.c.l.b16 %v1355
      %v1529 = vunpack.c.h.b16 %v1355
      %v1530 = vunpack.c.l.b16 %v1356
      %v1531 = vunpack.c.h.b16 %v1356
      %v1532 = vunpack.c.l.b16 %v1357
      %v1533 = vunpack.c.h.b16 %v1357
      %v1534 = vunpack.c.l.b16 %v1358
      %v1535 = vunpack.c.h.b16 %v1358
      %v1536 = vunpack.c.l.b16 %v1359
      %v1537 = vunpack.c.h.b16 %v1359
      %v1538 = vunpack.c.l.b16 %v1360
      %v1539 = vunpack.c.h.b16 %v1360
      %v1540 = vunpack.c.l.b16 %v1361
      %v1541 = vunpack.c.h.b16 %v1361
      %v1542 = vpack.c.b16 %v1512, %v1510
      %v1543 = vpack.c.b16 %v1513, %v1511
      %v1544 = vpack.c.b16 %v1516, %v1514
      %v1545 = vpack.c.b16 %v1517, %v1515
      %v1546 = vpack.c.b16 %v1520, %v1518
      %v1547 = vpack.c.b16 %v1521, %v1519
      %v1548 = vpack.c.b16 %v1524, %v1522
      %v1549 = vpack.c.b16 %v1525, %v1523
      %v1550 = vpack.c.b16 %v1528, %v1526
      %v1551 = vpack.c.b16 %v1529, %v1527
      %v1552 = vpack.c.b16 %v1532, %v1530
      %v1553 = vpack.c.b16 %v1533, %v1531
      %v1554 = vpack.c.b16 %v1536, %v1534
      %v1555 = vpack.c.b16 %v1537, %v1535
      %v1556 = vpack.c.b16 %v1540, %v1538
      %v1557 = vpack.c.b16 %v1541, %v1539
      %v1602 = vunpack.c.l.b16 %v1362
      %v1603 = vunpack.c.h.b16 %v1362
      %v1604 = vunpack.c.l.b16 %v1363
      %v1605 = vunpack.c.l.b16 %v1364
      %v1606 = vunpack.c.h.b16 %v1364
      %v1607 = vunpack.c.l.b16 %v1365
      %v1608 = vunpack.c.l.b16 %v1366
      %v1609 = vunpack.c.h.b16 %v1366
      %v1610 = vunpack.c.l.b16 %v1367
      %v1611 = vunpack.c.l.b16 %v1368
      %v1612 = vunpack.c.h.b16 %v1368
      %v1613 = vunpack.c.l.b16 %v1369
      %v1614 = vunpack.c.l.b16 %v1370
      %v1615 = vunpack.c.h.b16 %v1370
      %v1616 = vunpack.c.l.b16 %v1371
      %v1617 = vunpack.c.l.b16 %v1372
      %v1618 = vunpack.c.h.b16 %v1372
      %v1619 = vunpack.c.l.b16 %v1373
      %v1620 = vunpack.c.l.b16 %v1374
      %v1621 = vunpack.c.h.b16 %v1374
      %v1622 = vunpack.c.l.b16 %v1375
      %v1623 = vunpack.c.l.b16 %v1376
      %v1624 = vunpack.c.h.b16 %v1376
      %v1625 = vunpack.c.l.b16 %v1377
      %v1626 = vunpack.c.l.b16 %v1378
      %v1627 = vunpack.c.h.b16 %v1378
      %v1628 = vunpack.c.l.b16 %v1379
      %v1629 = vunpack.c.l.b16 %v1380
      %v1630 = vunpack.c.h.b16 %v1380
      %v1631 = vunpack.c.l.b16 %v1381
      %v1632 = vunpack.c.l.b16 %v1382
      %v1633 = vunpack.c.h.b16 %v1382
      %v1634 = vunpack.c.l.b16 %v1383
      %v1635 = vunpack.c.l.b16 %v1384
      %v1636 = vunpack.c.h.b16 %v1384
      %v1637 = vunpack.c.l.b16 %v1385
      %v1638 = vunpack.c.l.b16 %v1386
      %v1639 = vunpack.c.h.b16 %v1386
      %v1640 = vunpack.c.l.b16 %v1387
      %v1641 = vunpack.c.l.b16 %v1388
      %v1642 = vunpack.c.h.b16 %v1388
      %v1643 = vunpack.c.l.b16 %v1389
      %v1644 = vunpack.c.l.b16 %v1390
      %v1645 = vunpack.c.h.b16 %v1390
      %v1646 = vunpack.c.l.b16 %v1391
      %v1647 = vunpack.c.l.b16 %v1392
      %v1648 = vunpack.c.h.b16 %v1392
      %v1649 = vunpack.c.l.b16 %v1393
      %v1650 = vunpack.c.l.b16 %v1394
      %v1651 = vunpack.c.h.b16 %v1394
      %v1652 = vunpack.c.l.b16 %v1395
      %v1653 = vunpack.c.l.b16 %v1396
      %v1654 = vunpack.c.h.b16 %v1396
      %v1655 = vunpack.c.l.b16 %v1397
      %v1656 = vpack.c.b16 %v1605, %v1602
      %v1657 = vpack.c.b16 %v1606, %v1603
      %v1658 = vpack.c.b16 %v1607, %v1604
      %v1659 = vpack.c.b16 %v1611, %v1608
      %v1660 = vpack.c.b16 %v1612, %v1609
      %v1661 = vpack.c.b16 %v1613, %v1610
      %v1662 = vpack.c.b16 %v1617, %v1614
      %v1663 = vpack.c.b16 %v1618, %v1615
      %v1664 = vpack.c.b16 %v1619, %v1616
      %v1665 = vpack.c.b16 %v1623, %v1620
      %v1666 = vpack.c.b16 %v1624, %v1621
      %v1667 = vpack.c.b16 %v1625, %v1622
      %v1668 = vpack.c.b16 %v1629, %v1626
      %v1669 = vpack.c.b16 %v1630, %v1627
      %v1670 = vpack.c.b16 %v1631, %v1628
      %v1671 = vpack.c.b16 %v1635, %v1632
      %v1672 = vpack.c.b16 %v1636, %v1633
      %v1673 = vpack.c.b16 %v1637, %v1634
      %v1674 = vpack.c.b16 %v1641, %v1638
      %v1675 = vpack.c.b16 %v1642, %v1639
      %v1676 = vpack.c.b16 %v1643, %v1640
      %v1677 = vpack.c.b16 %v1647, %v1644
      %v1678 = vpack.c.b16 %v1648, %v1645
      %v1679 = vpack.c.b16 %v1649, %v1646
      %v1680 = vpack.c.b16 %v1653, %v1650
      %v1681 = vpack.c.b16 %v1654, %v1651
      %v1682 = vpack.c.b16 %v1655, %v1652
      %v1711 = vsel %vm787, %v1543, 0
      %v1714 = vsel %vm787, %v1545, 0
      %v1717 = vsel %vm787, %v1547, 0
      %v1720 = vsel %vm787, %v1549, 0
      %v1723 = vsel %vm787, %v1551, 0
      %v1726 = vsel %vm787, %v1553, 0
      %v1729 = vsel %vm787, %v1555, 0
      %v1732 = vsel %vm787, %v1557, 0
      %1734 = vmatprep.subr.bf16.mxu0 %v1678
      %1735 = vmatpush1.bf16.msra.mxu0 %v1677
      %1736 = vmatprep.subr.bf16.mxu0 %v1675
      %1737 = vmatpush1.bf16.msra.mxu0 %v1674
      %1738 = vmatprep.subr.bf16.mxu0 %v1672
      %1739 = vmatpush1.bf16.msra.mxu0 %v1671
      %1740 = vmatprep.subr.bf16.mxu0 %v1669
      %1741 = vmatpush1.bf16.msra.mxu0 %v1668
      %1742 = vmatprep.subr.bf16.mxu0 %v1666
      %1743 = vmatpush1.bf16.msra.mxu0 %v1665
      %1744 = vmatprep.subr.bf16.mxu0 %v1663
      %1745 = vmatpush1.bf16.msra.mxu0 %v1662
      %1746 = vmatprep.subr.bf16.mxu0 %v1660
      %1747 = vmatpush1.bf16.msra.mxu0 %v1659
      %1748 = vmatprep.subr.bf16.mxu0 %v1657
      %1749 = vmatpush1.bf16.msra.mxu0 %v1656
      %1750 = vmatprep.subr.bf16.mxu0 0
      %1751 = vmatpush2.bf16.msra.mxu0 0
      %1752 = vmatprep.subr.bf16.mxu0 0
      %1753 = vmatpush2.bf16.msra.mxu0 0
      %1754 = vmatprep.subr.bf16.mxu0 0
      %1755 = vmatpush2.bf16.msra.mxu0 0
      %1756 = vmatprep.subr.bf16.mxu0 0
      %1757 = vmatpush2.bf16.msra.mxu0 0
      %1758 = vmatprep.subr.bf16.mxu0 0
      %1759 = vmatpush2.bf16.msra.mxu0 0
      %1760 = vmatprep.subr.bf16.mxu0 0
      %1761 = vmatpush2.bf16.msra.mxu0 0
      %1762 = vmatprep.subr.bf16.mxu0 0
      %1763 = vmatpush2.bf16.msra.mxu0 0
      %1764 = vmatprep.subr.bf16.mxu0 %v1681
      %1765 = vmatpush2.bf16.msra.mxu0 %v1680
      %1766 = vmatprep.mubr.bf16.mxu0 %v1711
      %1767 = vmatmul.mubr.bf16.gmra.mxu0 %v1542
      %v1768 = vpop.f32.mrf.mxu0
      %v1769 = vadd.f32 %v1417, %v1768
      %v1770 = vpop.f32.mrf.mxu0
      %v1771 = vadd.f32 %v1417, %v1770
      %v1772 = vpop.f32.mrf.mxu0
      %v1773 = vadd.f32 %v1422, %v1772
      %v1774 = vpop.f32.mrf.mxu0
      %v1775 = vadd.f32 %v1422, %v1774
      %1776 = vmatprep.mubr.bf16.mxu0 %v1714
      %1777 = vmatmul.mubr.bf16.gmra.mxu0 %v1544
      %v1778 = vpop.f32.mrf.mxu0
      %v1779 = vadd.f32 %v1427, %v1778
      %v1780 = vpop.f32.mrf.mxu0
      %v1781 = vadd.f32 %v1427, %v1780
      %v1782 = vpop.f32.mrf.mxu0
      %v1783 = vadd.f32 %v1432, %v1782
      %v1784 = vpop.f32.mrf.mxu0
      %v1785 = vadd.f32 %v1432, %v1784
      %1786 = vmatprep.mubr.bf16.mxu0 %v1717
      %1787 = vmatmul.mubr.bf16.gmra.mxu0 %v1546
      %v1788 = vpop.f32.mrf.mxu0
      %v1789 = vadd.f32 %v1437, %v1788
      %v1790 = vpop.f32.mrf.mxu0
      %v1791 = vadd.f32 %v1437, %v1790
      %v1792 = vpop.f32.mrf.mxu0
      %v1793 = vadd.f32 %v1442, %v1792
      %v1794 = vpop.f32.mrf.mxu0
      %v1795 = vadd.f32 %v1442, %v1794
      %1796 = vmatprep.mubr.bf16.mxu0 %v1720
      %1797 = vmatmul.mubr.bf16.gmra.mxu0 %v1548
      %v1798 = vpop.f32.mrf.mxu0
      %v1799 = vadd.f32 %v1447, %v1798
      %v1800 = vpop.f32.mrf.mxu0
      %v1801 = vadd.f32 %v1447, %v1800
      %v1802 = vpop.f32.mrf.mxu0
      %v1803 = vadd.f32 %v1452, %v1802
      %v1804 = vpop.f32.mrf.mxu0
      %v1805 = vadd.f32 %v1452, %v1804
      %1806 = vmatprep.mubr.bf16.mxu0 %v1723
      %1807 = vmatmul.mubr.bf16.gmra.mxu0 %v1550
      %v1808 = vpop.f32.mrf.mxu0
      %v1809 = vadd.f32 %v1457, %v1808
      %v1810 = vpop.f32.mrf.mxu0
      %v1811 = vadd.f32 %v1457, %v1810
      %v1812 = vpop.f32.mrf.mxu0
      %v1813 = vadd.f32 %v1462, %v1812
      %v1814 = vpop.f32.mrf.mxu0
      %v1815 = vadd.f32 %v1462, %v1814
      %1816 = vmatprep.mubr.bf16.mxu0 %v1726
      %1817 = vmatmul.mubr.bf16.gmra.mxu0 %v1552
      %v1818 = vpop.f32.mrf.mxu0
      %v1819 = vadd.f32 %v1467, %v1818
      %v1820 = vpop.f32.mrf.mxu0
      %v1821 = vadd.f32 %v1467, %v1820
      %v1822 = vpop.f32.mrf.mxu0
      %v1823 = vadd.f32 %v1472, %v1822
      %v1824 = vpop.f32.mrf.mxu0
      %v1825 = vadd.f32 %v1472, %v1824
      %1826 = vmatprep.mubr.bf16.mxu0 %v1729
      %1827 = vmatmul.mubr.bf16.gmra.mxu0 %v1554
      %v1828 = vpop.f32.mrf.mxu0
      %v1829 = vadd.f32 %v1477, %v1828
      %v1830 = vpop.f32.mrf.mxu0
      %v1831 = vadd.f32 %v1477, %v1830
      %v1832 = vpop.f32.mrf.mxu0
      %v1833 = vadd.f32 %v1482, %v1832
      %v1834 = vpop.f32.mrf.mxu0
      %v1835 = vadd.f32 %v1482, %v1834
      %1836 = vmatprep.mubr.bf16.mxu0 %v1732
      %1837 = vmatmul.mubr.bf16.gmra.mxu0 %v1556
      %v1838 = vpop.f32.mrf.mxu0
      %v1839 = vadd.f32 %v1487, %v1838
      %v1840 = vpop.f32.mrf.mxu0
      %v1841 = vadd.f32 %v1487, %v1840
      %v1842 = vpop.f32.mrf.mxu0
      %v1843 = vadd.f32 %v1492, %v1842
      %v1844 = vpop.f32.mrf.mxu0
      %v1845 = vadd.f32 %v1492, %v1844
      %1846 = vdwg.mxu0
      %1847 = vmatprep.subr.bf16.mxu0 0
      %1848 = vmatpush1.bf16.msra.mxu0 %v1679
      %1849 = vmatprep.subr.bf16.mxu0 0
      %1850 = vmatpush1.bf16.msra.mxu0 %v1676
      %1851 = vmatprep.subr.bf16.mxu0 0
      %1852 = vmatpush1.bf16.msra.mxu0 %v1673
      %1853 = vmatprep.subr.bf16.mxu0 0
      %1854 = vmatpush1.bf16.msra.mxu0 %v1670
      %1855 = vmatprep.subr.bf16.mxu0 0
      %1856 = vmatpush1.bf16.msra.mxu0 %v1667
      %1857 = vmatprep.subr.bf16.mxu0 0
      %1858 = vmatpush1.bf16.msra.mxu0 %v1664
      %1859 = vmatprep.subr.bf16.mxu0 0
      %1860 = vmatpush1.bf16.msra.mxu0 %v1661
      %1861 = vmatprep.subr.bf16.mxu0 0
      %1862 = vmatpush1.bf16.msra.mxu0 %v1658
      %1863 = vmatprep.subr.bf16.mxu0 0
      %1864 = vmatpush2.bf16.msra.mxu0 0
      %1865 = vmatprep.subr.bf16.mxu0 0
      %1866 = vmatpush2.bf16.msra.mxu0 0
      %1867 = vmatprep.subr.bf16.mxu0 0
      %1868 = vmatpush2.bf16.msra.mxu0 0
      %1869 = vmatprep.subr.bf16.mxu0 0
      %1870 = vmatpush2.bf16.msra.mxu0 0
      %1871 = vmatprep.subr.bf16.mxu0 0
      %1872 = vmatpush2.bf16.msra.mxu0 0
      %1873 = vmatprep.subr.bf16.mxu0 0
      %1874 = vmatpush2.bf16.msra.mxu0 0
      %1875 = vmatprep.subr.bf16.mxu0 0
      %1876 = vmatpush2.bf16.msra.mxu0 0
      %1877 = vmatprep.subr.bf16.mxu0 0
      %1878 = vmatpush2.bf16.msra.mxu0 %v1682
      %1879 = vmatprep.mubr.bf16.mxu0 %v1711
      %1880 = vmatmul.mubr.bf16.gmra.mxu0 %v1542
      %v1881 = vpop.f32.mrf.mxu0
      %v1882 = vadd.f32 %v1417, %v1881
      %v1883 = vpop.f32.mrf.mxu0
      %v1884 = vpop.f32.mrf.mxu0
      %v1885 = vadd.f32 %v1422, %v1884
      %v1886 = vpop.f32.mrf.mxu0
      %1887 = vmatprep.mubr.bf16.mxu0 %v1714
      %1888 = vmatmul.mubr.bf16.gmra.mxu0 %v1544
      %v1889 = vpop.f32.mrf.mxu0
      %v1890 = vadd.f32 %v1427, %v1889
      %v1891 = vpop.f32.mrf.mxu0
      %v1892 = vpop.f32.mrf.mxu0
      %v1893 = vadd.f32 %v1432, %v1892
      %v1894 = vpop.f32.mrf.mxu0
      %1895 = vmatprep.mubr.bf16.mxu0 %v1717
      %1896 = vmatmul.mubr.bf16.gmra.mxu0 %v1546
      %v1897 = vpop.f32.mrf.mxu0
      %v1898 = vadd.f32 %v1437, %v1897
      %v1899 = vpop.f32.mrf.mxu0
      %v1900 = vpop.f32.mrf.mxu0
      %v1901 = vadd.f32 %v1442, %v1900
      %v1902 = vpop.f32.mrf.mxu0
      %1903 = vmatprep.mubr.bf16.mxu0 %v1720
      %1904 = vmatmul.mubr.bf16.gmra.mxu0 %v1548
      %v1905 = vpop.f32.mrf.mxu0
      %v1906 = vadd.f32 %v1447, %v1905
      %v1907 = vpop.f32.mrf.mxu0
      %v1908 = vpop.f32.mrf.mxu0
      %v1909 = vadd.f32 %v1452, %v1908
      %v1910 = vpop.f32.mrf.mxu0
      %1911 = vmatprep.mubr.bf16.mxu0 %v1723
      %1912 = vmatmul.mubr.bf16.gmra.mxu0 %v1550
      %v1913 = vpop.f32.mrf.mxu0
      %v1914 = vadd.f32 %v1457, %v1913
      %v1915 = vpop.f32.mrf.mxu0
      %v1916 = vpop.f32.mrf.mxu0
      %v1917 = vadd.f32 %v1462, %v1916
      %v1918 = vpop.f32.mrf.mxu0
      %1919 = vmatprep.mubr.bf16.mxu0 %v1726
      %1920 = vmatmul.mubr.bf16.gmra.mxu0 %v1552
      %v1921 = vpop.f32.mrf.mxu0
      %v1922 = vadd.f32 %v1467, %v1921
      %v1923 = vpop.f32.mrf.mxu0
      %v1924 = vpop.f32.mrf.mxu0
      %v1925 = vadd.f32 %v1472, %v1924
      %v1926 = vpop.f32.mrf.mxu0
      %1927 = vmatprep.mubr.bf16.mxu0 %v1729
      %1928 = vmatmul.mubr.bf16.gmra.mxu0 %v1554
      %v1929 = vpop.f32.mrf.mxu0
      %v1930 = vadd.f32 %v1477, %v1929
      %v1931 = vpop.f32.mrf.mxu0
      %v1932 = vpop.f32.mrf.mxu0
      %v1933 = vadd.f32 %v1482, %v1932
      %v1934 = vpop.f32.mrf.mxu0
      %1935 = vmatprep.mubr.bf16.mxu0 %v1732
      %1936 = vmatmul.mubr.bf16.gmra.mxu0 %v1556
      %v1937 = vpop.f32.mrf.mxu0
      %v1938 = vadd.f32 %v1487, %v1937
      %v1939 = vpop.f32.mrf.mxu0
      %v1940 = vpop.f32.mrf.mxu0
      %v1941 = vadd.f32 %v1492, %v1940
      %v1942 = vpop.f32.mrf.mxu0
      %1943 = vdwg.mxu0
      %1944 = vst [vmem:[%s305] sm:$0xff] %v1769
      %1945 = vst [vmem:[%s305 + $0x8] sm:$0xff] %v1771
      %1946 = vst [vmem:[%s305 + $0x10] sm:$0xff] %v1882
      %1947 = vst [vmem:[%s305 + $0x18] sm:$0xff] %v1773
      %1948 = vst [vmem:[%s305 + $0x20] sm:$0xff] %v1775
      %1949 = vst [vmem:[%s305 + $0x28] sm:$0xff] %v1885
      %1950 = vst [vmem:[%s305 + $0x30] sm:$0xff] %v1779
      %1951 = vst [vmem:[%s305 + $0x38] sm:$0xff] %v1781
      %1952 = vst [vmem:[%s305 + $0x40] sm:$0xff] %v1890
      %1953 = vst [vmem:[%s305 + $0x48] sm:$0xff] %v1783
      %1954 = vst [vmem:[%s305 + $0x50] sm:$0xff] %v1785
      %1955 = vst [vmem:[%s305 + $0x58] sm:$0xff] %v1893
      %1956 = vst [vmem:[%s305 + $0x60] sm:$0xff] %v1789
      %1957 = vst [vmem:[%s305 + $0x68] sm:$0xff] %v1791
      %1958 = vst [vmem:[%s305 + $0x70] sm:$0xff] %v1898
      %1959 = vst [vmem:[%s305 + $0x78] sm:$0xff] %v1793
      %1960 = vst [vmem:[%s305 + $0x80] sm:$0xff] %v1795
      %1961 = vst [vmem:[%s305 + $0x88] sm:$0xff] %v1901
      %1962 = vst [vmem:[%s305 + $0x90] sm:$0xff] %v1799
      %1963 = vst [vmem:[%s305 + $0x98] sm:$0xff] %v1801
      %1964 = vst [vmem:[%s305 + $0xa0] sm:$0xff] %v1906
      %1965 = vst [vmem:[%s305 + $0xa8] sm:$0xff] %v1803
      %1966 = vst [vmem:[%s305 + $0xb0] sm:$0xff] %v1805
      %1967 = vst [vmem:[%s305 + $0xb8] sm:$0xff] %v1909
      %1968 = vst [vmem:[%s305 + $0xc0] sm:$0xff] %v1809
      %1969 = vst [vmem:[%s305 + $0xc8] sm:$0xff] %v1811
      %1970 = vst [vmem:[%s305 + $0xd0] sm:$0xff] %v1914
      %1971 = vst [vmem:[%s305 + $0xd8] sm:$0xff] %v1813
      %1972 = vst [vmem:[%s305 + $0xe0] sm:$0xff] %v1815
      %1973 = vst [vmem:[%s305 + $0xe8] sm:$0xff] %v1917
      %1974 = vst [vmem:[%s305 + $0xf0] sm:$0xff] %v1819
      %1975 = vst [vmem:[%s305 + $0xf8] sm:$0xff] %v1821
      %1976 = vst [vmem:[%s305 + $0x100] sm:$0xff] %v1922
      %1977 = vst [vmem:[%s305 + $0x108] sm:$0xff] %v1823
      %1978 = vst [vmem:[%s305 + $0x110] sm:$0xff] %v1825
      %1979 = vst [vmem:[%s305 + $0x118] sm:$0xff] %v1925
      %1980 = vst [vmem:[%s305 + $0x120] sm:$0xff] %v1829
      %1981 = vst [vmem:[%s305 + $0x128] sm:$0xff] %v1831
      %1982 = vst [vmem:[%s305 + $0x130] sm:$0xff] %v1930
      %1983 = vst [vmem:[%s305 + $0x138] sm:$0xff] %v1833
      %1984 = vst [vmem:[%s305 + $0x140] sm:$0xff] %v1835
      %1985 = vst [vmem:[%s305 + $0x148] sm:$0xff] %v1933
      %1986 = vst [vmem:[%s305 + $0x150] sm:$0xff] %v1839
      %1987 = vst [vmem:[%s305 + $0x158] sm:$0xff] %v1841
      %1988 = vst [vmem:[%s305 + $0x160] sm:$0xff] %v1938
      %1989 = vst [vmem:[%s305 + $0x168] sm:$0xff] %v1843
      %1990 = vst [vmem:[%s305 + $0x170] sm:$0xff] %v1845
      %1991 = vst [vmem:[%s305 + $0x178] sm:$0xff] %v1941
      %p1992 = scmp.lt.s32.totalorder %s19, 1
      %s1993 = scalar_select %p1992, %s19, 1
      %s1994 = smul.addr %s1993, 48
      %s1995 = smul.addr %s1994, 8
      %s1996 = scalar_lea.vmem %s8, %s1995
      // Predicated region
      $region53: #{wav_unpack_layer.1} parent=51 // pred_check
        %p1997 = pneg %p210
      $region54: #{wav_unpack_layer.1} parent=51 // pred_check_branch
        %1999 = sbr.rel (%p1997) target = $region56
      $region55: #{wav_unpack_layer.1} parent=51 // pred_region
        _
      $region56: #{wav_unpack_layer.1} parent=51 // pred_fallthru
        _
    $region52: #{wav_unpack_layer.1} parent=5 // pred_fallthru
      _
    %p2000 = scmp.le.s32.totalorder 2, %s14
    // Predicated region
    $region57: #{wav_unpack_layer.1} parent=5 // pred_check
      %p2001 = pneg %p2000
    $region58: #{wav_unpack_layer.1} parent=5 // pred_check_branch
      %2003 = sbr.rel (%p2001) target = $region60
    $region59: #{wav_unpack_layer.1} parent=5 // pred_region
      %s2004 = ssub.s32 %s14, 2
      // Predicated region
      $region61: #{wav_unpack_layer.1} parent=59 // pred_check
        %p2005 = pneg %p216
      $region62: #{wav_unpack_layer.1} parent=59 // pred_check_branch
        %2007 = sbr.rel (%p2005) target = $region64
      $region63: #{wav_unpack_layer.1} parent=59 // pred_region
        %p2008 = scmp.lt.s32.totalorder %s20, 1
        %s2009 = scalar_select %p2008, %s20, 1
        %s2010 = smul.addr %s2009, 48
        %s2011 = smul.addr %s2010, 8
        %s2012 = scalar_lea.vmem %s8, %s2011
      $region64: #{wav_unpack_layer.1} parent=59 // pred_fallthru
        _
    $region60: #{wav_unpack_layer.1} parent=5 // pred_fallthru
      _
  $region6: #{wav_unpack_layer.1} parent=0 // loop_footer
    %s18 = sadd.s32 1, %s14
  $region7: #{wav_unpack_layer.1} parent=0 // loop_footer_branch
    %13 = sbr.rel target = $region3
  $region8: #{wav_unpack_layer.1} parent=0 // loop_exit
    _

</llo_original>
